<compile_context>
chip_gen: v7x
topology: tpu7x:2x2x1
jax: 0.10.0
libtpu: 0.0.40
codegen_flags: <defaults>
</compile_context>

<pallas_src>
import jax
import jax.numpy as jnp
from jax.experimental import pallas as pl
from jax.experimental.pallas import tpu as pltpu


def _make_kernel(H, W, K, inv_c):
    def kernel(a_ref, m_ref, x_ref, o_ref, sum_acc, max_acc):
        ci = pl.program_id(1)
        nci = pl.num_programs(1)

        @pl.when(ci == 0)
        def _init():
            sum_acc[...] = jnp.zeros_like(sum_acc)
            max_acc[...] = jnp.full_like(max_acc, -jnp.inf)

        # (c_tile, H, W) slab; reduce over the leading (channel) axis = pure
        # VPU adds/maxes into lane-resident (H, W) accumulators.
        x = x_ref[...].astype(jnp.float32)
        sum_acc[...] = sum_acc[...] + jnp.sum(x, axis=0)
        max_acc[...] = jnp.maximum(max_acc[...], jnp.max(x, axis=0))

        @pl.when(ci == nci - 1)
        def _finalize():
            avg = sum_acc[...] * inv_c          # mean applied once
            mx = max_acc[...]
            # "same" KxK conv over the 2-channel (avg, max) map as matmuls:
            #   out = sum_kh  A[kh] @ avg @ M[0, kh]  +  A[kh] @ mx @ M[1, kh]
            # A[kh]: (H, H) row-shift-with-zero-fill operator
            # M[c, kh]: (W, W) banded matrix built from conv weight row kh.
            acc = jnp.zeros((H, W), jnp.float32)
            for kh in range(K):
                a = a_ref[kh]                                      # (H, H)
                s_avg = jnp.dot(a, avg, preferred_element_type=jnp.float32)
                s_max = jnp.dot(a, mx, preferred_element_type=jnp.float32)
                acc = acc + jnp.dot(s_avg, m_ref[0, kh],
                                    preferred_element_type=jnp.float32)
                acc = acc + jnp.dot(s_max, m_ref[1, kh],
                                    preferred_element_type=jnp.float32)
            o_ref[...] = jax.nn.sigmoid(acc).astype(o_ref.dtype)

    return kernel


def _pick_c_tile(C, H, W, itemsize, budget_bytes=2 << 20):
    # Largest divisor of C whose (c_tile, H, W) block stays under ~2 MiB per
    # buffer (so the double-buffered input block is <= ~4 MiB: safe for
    # v7x's smaller scoped VMEM while still giving deep pipelining).
    best = 1
    for d in range(1, C + 1):
        if C % d == 0 and d * H * W * itemsize <= budget_bytes:
            best = d
    return best


def spatial_attention(x, weight, *, c_tile=None):
    """x: (N, C, H, W); weight: PyTorch Conv2d(2, 1, K, bias=False) weight,
    shape (1, 2, K, K) or (2, K, K). Returns (N, 1, H, W)."""
    N, C, H, W = x.shape
    wgt = jnp.asarray(weight, jnp.float32)
    if wgt.ndim == 4:
        wgt = wgt[0]                                    # (2, K, K)
    assert wgt.shape[0] == 2 and wgt.shape[1] == wgt.shape[2]
    K = wgt.shape[1]
    P = K // 2

    if c_tile is None:
        c_tile = _pick_c_tile(C, H, W, x.dtype.itemsize)
    assert C % c_tile == 0, "channel tile must divide C"

    # Precompute (plain XLA, outside the kernel) the conv-as-matmul operands.
    # A[kh, h, i] = 1 iff i == h + kh - P            (row shift w/ zero fill)
    h_idx = jnp.arange(H)
    a_mats = (h_idx[None, None, :] ==
              (h_idx[None, :, None] + jnp.arange(K)[:, None, None] - P)
              ).astype(jnp.float32)                     # (K, H, H)
    # M[c, kh, j, w] = weight[c, kh, j - w + P] if 0 <= j - w + P < K else 0
    j_idx = jnp.arange(W)[:, None]
    w_idx = jnp.arange(W)[None, :]
    d = j_idx - w_idx + P                               # (W, W)
    valid = (d >= 0) & (d < K)
    d_cl = jnp.clip(d, 0, K - 1)
    m_mats = jnp.where(valid[None, None, :, :], wgt[:, :, d_cl], 0.0)  # (2, K, W, W)

    kernel = _make_kernel(H, W, K, 1.0 / float(C))

    out = pl.pallas_call(
        kernel,
        out_shape=jax.ShapeDtypeStruct((N, 1, H, W), x.dtype),
        grid_spec=pltpu.PrefetchScalarGridSpec(
            num_scalar_prefetch=0,
            grid=(N, C // c_tile),
            in_specs=[
                pl.BlockSpec((K, H, H), lambda n, c: (0, 0, 0)),
                pl.BlockSpec((2, K, W, W), lambda n, c: (0, 0, 0, 0)),
                pl.BlockSpec((None, c_tile, H, W), lambda n, c: (n, c, 0, 0)),
            ],
            out_specs=pl.BlockSpec((None, None, H, W), lambda n, c: (n, 0, 0, 0)),
            scratch_shapes=[
                pltpu.VMEM((H, W), jnp.float32),   # running channel sum
                pltpu.VMEM((H, W), jnp.float32),   # running channel max
            ],
        ),
        compiler_params=pltpu.CompilerParams(
            dimension_semantics=("parallel", "arbitrary")),
    )(a_mats, m_mats, x)
    return out


if __name__ == "__main__":
    N, C, H, W = 2, 8, 16, 16
    K = 7

    key = jax.random.PRNGKey(0)
    kx, kw = jax.random.split(key)
    x = jax.random.normal(kx, (N, C, H, W), dtype=jnp.float32)
    # Conv2d(2, 1, K, padding=K//2, bias=False) weight with kaiming-like scale.
    w = jax.random.normal(kw, (1, 2, K, K), dtype=jnp.float32) * (2.0 / (2 * K * K)) ** 0.5

    # c_tile=4 -> two channel tiles per batch element: exercises the
    # init / accumulate / finalize path across grid steps.
    out = spatial_attention(x, w, c_tile=4)
    out = jax.block_until_ready(out)

    # Pure-JAX reference of the same forward pass.
    avg = jnp.mean(x, axis=1, keepdims=True)
    mx = jnp.max(x, axis=1, keepdims=True)
    cat = jnp.concatenate([avg, mx], axis=1)                       # (N, 2, H, W)
    ref = jax.lax.conv_general_dilated(
        cat, w, window_strides=(1, 1),
        padding=((K // 2, K // 2), (K // 2, K // 2)),
        dimension_numbers=("NCHW", "OIHW", "NCHW"))
    ref = jax.nn.sigmoid(ref)

    assert out.shape == (N, 1, H, W)
    assert jnp.allclose(out, ref, atol=2e-5, rtol=2e-5), "mismatch vs reference"
    print("KERNEL_OK")
</pallas_src>

<mosaic_0001>
module attributes {stable_mosaic.version = 11 : i64} {
  func.func @kernel(%arg0: i32, %arg1: i32, %arg2: memref<7x16x16xf32, #tpu.memory_space<vmem>>, %arg3: memref<2x7x16x16xf32, #tpu.memory_space<vmem>>, %arg4: memref<1x4x16x16xf32, #tpu.memory_space<vmem>>, %arg5: memref<1x1x16x16xf32, #tpu.memory_space<vmem>>, %arg6: memref<16x16xf32, #tpu.memory_space<vmem>>, %arg7: memref<16x16xf32, #tpu.memory_space<vmem>>) attributes {dimension_semantics = [#tpu.dimension_semantics<parallel>, #tpu.dimension_semantics<arbitrary>], iteration_bounds = array<i64: 2, 2>, scalar_prefetch = 0 : i64, scratch_operands = 2 : i64, tpu.core_type = #tpu.core_type<tc>, window_params = [{pipeline_mode = #tpu.pipeline_mode<synchronous>, transform_indices = @transform_0, window_bounds = array<i64: 7, 16, 16>}, {pipeline_mode = #tpu.pipeline_mode<synchronous>, transform_indices = @transform_1, window_bounds = array<i64: 2, 7, 16, 16>}, {transform_indices = @transform_2, window_bounds = array<i64: 1, 4, 16, 16>}, {transform_indices = @transform_3, window_bounds = array<i64: 1, 1, 16, 16>}]} {
    %c0_i32 = arith.constant 0 : i32
    %0 = arith.cmpi eq, %arg1, %c0_i32 : i32
    %1 = arith.extui %0 : i1 to i32
    %c0_i32_0 = arith.constant 0 : i32
    %2 = arith.cmpi ne, %1, %c0_i32_0 : i32
    scf.if %2 {
      %cst_14 = arith.constant 0.000000e+00 : f32
      %16 = vector.broadcast %cst_14 : f32 to vector<16x16xf32>
      %c0_15 = arith.constant 0 : index
      %c0_16 = arith.constant 0 : index
      %17 = vector.load %arg6[%c0_15, %c0_16] : memref<16x16xf32, #tpu.memory_space<vmem>>, vector<16x16xf32>
      tpu.vector_store %arg6[%c0_15, %c0_16], %16 {strides = array<i32>} : memref<16x16xf32, #tpu.memory_space<vmem>>, vector<16x16xf32>,
      %cst_17 = arith.constant 0xFF800000 : f32
      %18 = vector.broadcast %cst_17 : f32 to vector<16x16xf32>
      %c0_18 = arith.constant 0 : index
      %c0_19 = arith.constant 0 : index
      %19 = vector.load %arg7[%c0_18, %c0_19] : memref<16x16xf32, #tpu.memory_space<vmem>>, vector<16x16xf32>
      tpu.vector_store %arg7[%c0_18, %c0_19], %18 {strides = array<i32>} : memref<16x16xf32, #tpu.memory_space<vmem>>, vector<16x16xf32>,
    } else {
    }
    %c0 = arith.constant 0 : index
    %c0_1 = arith.constant 0 : index
    %c0_2 = arith.constant 0 : index
    %c0_3 = arith.constant 0 : index
    %3 = vector.load %arg4[%c0, %c0_1, %c0_2, %c0_3] : memref<1x4x16x16xf32, #tpu.memory_space<vmem>>, vector<1x4x16x16xf32>
    %4 = vector.shape_cast %3 : vector<1x4x16x16xf32> to vector<4x16x16xf32>
    %c0_4 = arith.constant 0 : index
    %c0_5 = arith.constant 0 : index
    %5 = vector.load %arg6[%c0_4, %c0_5] : memref<16x16xf32, #tpu.memory_space<vmem>>, vector<16x16xf32>
    %cst = arith.constant dense<0.000000e+00> : vector<16x16xf32>
    %6 = vector.multi_reduction <add>, %4, %cst [0] : vector<4x16x16xf32> to vector<16x16xf32>
    %7 = arith.addf %5, %6 : vector<16x16xf32>
    %c0_6 = arith.constant 0 : index
    %c0_7 = arith.constant 0 : index
    %8 = vector.load %arg6[%c0_6, %c0_7] : memref<16x16xf32, #tpu.memory_space<vmem>>, vector<16x16xf32>
    tpu.vector_store %arg6[%c0_6, %c0_7], %7 {strides = array<i32>} : memref<16x16xf32, #tpu.memory_space<vmem>>, vector<16x16xf32>,
    %c0_8 = arith.constant 0 : index
    %c0_9 = arith.constant 0 : index
    %9 = vector.load %arg7[%c0_8, %c0_9] : memref<16x16xf32, #tpu.memory_space<vmem>>, vector<16x16xf32>
    %cst_10 = arith.constant dense<0xFF800000> : vector<16x16xf32>
    %10 = vector.multi_reduction <maximumf>, %4, %cst_10 [0] : vector<4x16x16xf32> to vector<16x16xf32>
    %11 = arith.maximumf %9, %10 : vector<16x16xf32>
    %c0_11 = arith.constant 0 : index
    %c0_12 = arith.constant 0 : index
    %12 = vector.load %arg7[%c0_11, %c0_12] : memref<16x16xf32, #tpu.memory_space<vmem>>, vector<16x16xf32>
    tpu.vector_store %arg7[%c0_11, %c0_12], %11 {strides = array<i32>} : memref<16x16xf32, #tpu.memory_space<vmem>>, vector<16x16xf32>,
    %c1_i32 = arith.constant 1 : i32
    %13 = arith.cmpi eq, %arg1, %c1_i32 : i32
    %14 = arith.extui %13 : i1 to i32
    %c0_i32_13 = arith.constant 0 : i32
    %15 = arith.cmpi ne, %14, %c0_i32_13 : i32
    scf.if %15 {
      %c0_14 = arith.constant 0 : index
      %c0_15 = arith.constant 0 : index
      %16 = vector.load %arg6[%c0_14, %c0_15] : memref<16x16xf32, #tpu.memory_space<vmem>>, vector<16x16xf32>
      %cst_16 = arith.constant 1.250000e-01 : f32
      %17 = vector.broadcast %cst_16 : f32 to vector<16x16xf32>
      %18 = arith.mulf %16, %17 : vector<16x16xf32>
      %c0_17 = arith.constant 0 : index
      %c0_18 = arith.constant 0 : index
      %19 = vector.load %arg7[%c0_17, %c0_18] : memref<16x16xf32, #tpu.memory_space<vmem>>, vector<16x16xf32>
      %cst_19 = arith.constant 0.000000e+00 : f32
      %20 = vector.broadcast %cst_19 : f32 to vector<16x16xf32>
      %c0_20 = arith.constant 0 : index
      %c0_21 = arith.constant 0 : index
      %c0_22 = arith.constant 0 : index
      %21 = vector.load %arg2[%c0_20, %c0_21, %c0_22] : memref<7x16x16xf32, #tpu.memory_space<vmem>>, vector<1x16x16xf32>
      %22 = vector.shape_cast %21 : vector<1x16x16xf32> to vector<16x16xf32>
      %cst_23 = arith.constant dense<0.000000e+00> : vector<16x16xf32>
      %23 = tpu.matmul %22, %18, %cst_23 {dimension_numbers = #tpu.dot_dimension_numbers<[1], [0], [0], [1], [0, 0, 1, 1], [], []>} : vector<16x16xf32>, vector<16x16xf32>, vector<16x16xf32> -> vector<16x16xf32>
      %cst_24 = arith.constant dense<0.000000e+00> : vector<16x16xf32>
      %24 = tpu.matmul %22, %19, %cst_24 {dimension_numbers = #tpu.dot_dimension_numbers<[1], [0], [0], [1], [0, 0, 1, 1], [], []>} : vector<16x16xf32>, vector<16x16xf32>, vector<16x16xf32> -> vector<16x16xf32>
      %c0_25 = arith.constant 0 : index
      %c0_26 = arith.constant 0 : index
      %c0_27 = arith.constant 0 : index
      %c0_28 = arith.constant 0 : index
      %25 = vector.load %arg3[%c0_25, %c0_26, %c0_27, %c0_28] : memref<2x7x16x16xf32, #tpu.memory_space<vmem>>, vector<1x1x16x16xf32>
      %26 = vector.shape_cast %25 : vector<1x1x16x16xf32> to vector<16x16xf32>
      %cst_29 = arith.constant dense<0.000000e+00> : vector<16x16xf32>
      %27 = tpu.matmul %23, %26, %cst_29 {dimension_numbers = #tpu.dot_dimension_numbers<[1], [0], [0], [1], [0, 0, 1, 1], [], []>} : vector<16x16xf32>, vector<16x16xf32>, vector<16x16xf32> -> vector<16x16xf32>
      %28 = arith.addf %20, %27 : vector<16x16xf32>
      %c1 = arith.constant 1 : index
      %c0_30 = arith.constant 0 : index
      %c0_31 = arith.constant 0 : index
      %c0_32 = arith.constant 0 : index
      %29 = vector.load %arg3[%c1, %c0_30, %c0_31, %c0_32] : memref<2x7x16x16xf32, #tpu.memory_space<vmem>>, vector<1x1x16x16xf32>
      %30 = vector.shape_cast %29 : vector<1x1x16x16xf32> to vector<16x16xf32>
      %cst_33 = arith.constant dense<0.000000e+00> : vector<16x16xf32>
      %31 = tpu.matmul %24, %30, %cst_33 {dimension_numbers = #tpu.dot_dimension_numbers<[1], [0], [0], [1], [0, 0, 1, 1], [], []>} : vector<16x16xf32>, vector<16x16xf32>, vector<16x16xf32> -> vector<16x16xf32>
      %32 = arith.addf %28, %31 : vector<16x16xf32>
      %c1_34 = arith.constant 1 : index
      %c0_35 = arith.constant 0 : index
      %c0_36 = arith.constant 0 : index
      %33 = vector.load %arg2[%c1_34, %c0_35, %c0_36] : memref<7x16x16xf32, #tpu.memory_space<vmem>>, vector<1x16x16xf32>
      %34 = vector.shape_cast %33 : vector<1x16x16xf32> to vector<16x16xf32>
      %cst_37 = arith.constant dense<0.000000e+00> : vector<16x16xf32>
      %35 = tpu.matmul %34, %18, %cst_37 {dimension_numbers = #tpu.dot_dimension_numbers<[1], [0], [0], [1], [0, 0, 1, 1], [], []>} : vector<16x16xf32>, vector<16x16xf32>, vector<16x16xf32> -> vector<16x16xf32>
      %cst_38 = arith.constant dense<0.000000e+00> : vector<16x16xf32>
      %36 = tpu.matmul %34, %19, %cst_38 {dimension_numbers = #tpu.dot_dimension_numbers<[1], [0], [0], [1], [0, 0, 1, 1], [], []>} : vector<16x16xf32>, vector<16x16xf32>, vector<16x16xf32> -> vector<16x16xf32>
      %c0_39 = arith.constant 0 : index
      %c1_40 = arith.constant 1 : index
      %c0_41 = arith.constant 0 : index
      %c0_42 = arith.constant 0 : index
      %37 = vector.load %arg3[%c0_39, %c1_40, %c0_41, %c0_42] : memref<2x7x16x16xf32, #tpu.memory_space<vmem>>, vector<1x1x16x16xf32>
      %38 = vector.shape_cast %37 : vector<1x1x16x16xf32> to vector<16x16xf32>
      %cst_43 = arith.constant dense<0.000000e+00> : vector<16x16xf32>
      %39 = tpu.matmul %35, %38, %cst_43 {dimension_numbers = #tpu.dot_dimension_numbers<[1], [0], [0], [1], [0, 0, 1, 1], [], []>} : vector<16x16xf32>, vector<16x16xf32>, vector<16x16xf32> -> vector<16x16xf32>
      %40 = arith.addf %32, %39 : vector<16x16xf32>
      %c1_44 = arith.constant 1 : index
      %c1_45 = arith.constant 1 : index
      %c0_46 = arith.constant 0 : index
      %c0_47 = arith.constant 0 : index
      %41 = vector.load %arg3[%c1_44, %c1_45, %c0_46, %c0_47] : memref<2x7x16x16xf32, #tpu.memory_space<vmem>>, vector<1x1x16x16xf32>
      %42 = vector.shape_cast %41 : vector<1x1x16x16xf32> to vector<16x16xf32>
      %cst_48 = arith.constant dense<0.000000e+00> : vector<16x16xf32>
      %43 = tpu.matmul %36, %42, %cst_48 {dimension_numbers = #tpu.dot_dimension_numbers<[1], [0], [0], [1], [0, 0, 1, 1], [], []>} : vector<16x16xf32>, vector<16x16xf32>, vector<16x16xf32> -> vector<16x16xf32>
      %44 = arith.addf %40, %43 : vector<16x16xf32>
      %c2 = arith.constant 2 : index
      %c0_49 = arith.constant 0 : index
      %c0_50 = arith.constant 0 : index
      %45 = vector.load %arg2[%c2, %c0_49, %c0_50] : memref<7x16x16xf32, #tpu.memory_space<vmem>>, vector<1x16x16xf32>
      %46 = vector.shape_cast %45 : vector<1x16x16xf32> to vector<16x16xf32>
      %cst_51 = arith.constant dense<0.000000e+00> : vector<16x16xf32>
      %47 = tpu.matmul %46, %18, %cst_51 {dimension_numbers = #tpu.dot_dimension_numbers<[1], [0], [0], [1], [0, 0, 1, 1], [], []>} : vector<16x16xf32>, vector<16x16xf32>, vector<16x16xf32> -> vector<16x16xf32>
      %cst_52 = arith.constant dense<0.000000e+00> : vector<16x16xf32>
      %48 = tpu.matmul %46, %19, %cst_52 {dimension_numbers = #tpu.dot_dimension_numbers<[1], [0], [0], [1], [0, 0, 1, 1], [], []>} : vector<16x16xf32>, vector<16x16xf32>, vector<16x16xf32> -> vector<16x16xf32>
      %c0_53 = arith.constant 0 : index
      %c2_54 = arith.constant 2 : index
      %c0_55 = arith.constant 0 : index
      %c0_56 = arith.constant 0 : index
      %49 = vector.load %arg3[%c0_53, %c2_54, %c0_55, %c0_56] : memref<2x7x16x16xf32, #tpu.memory_space<vmem>>, vector<1x1x16x16xf32>
      %50 = vector.shape_cast %49 : vector<1x1x16x16xf32> to vector<16x16xf32>
      %cst_57 = arith.constant dense<0.000000e+00> : vector<16x16xf32>
      %51 = tpu.matmul %47, %50, %cst_57 {dimension_numbers = #tpu.dot_dimension_numbers<[1], [0], [0], [1], [0, 0, 1, 1], [], []>} : vector<16x16xf32>, vector<16x16xf32>, vector<16x16xf32> -> vector<16x16xf32>
      %52 = arith.addf %44, %51 : vector<16x16xf32>
      %c1_58 = arith.constant 1 : index
      %c2_59 = arith.constant 2 : index
      %c0_60 = arith.constant 0 : index
      %c0_61 = arith.constant 0 : index
      %53 = vector.load %arg3[%c1_58, %c2_59, %c0_60, %c0_61] : memref<2x7x16x16xf32, #tpu.memory_space<vmem>>, vector<1x1x16x16xf32>
      %54 = vector.shape_cast %53 : vector<1x1x16x16xf32> to vector<16x16xf32>
      %cst_62 = arith.constant dense<0.000000e+00> : vector<16x16xf32>
      %55 = tpu.matmul %48, %54, %cst_62 {dimension_numbers = #tpu.dot_dimension_numbers<[1], [0], [0], [1], [0, 0, 1, 1], [], []>} : vector<16x16xf32>, vector<16x16xf32>, vector<16x16xf32> -> vector<16x16xf32>
      %56 = arith.addf %52, %55 : vector<16x16xf32>
      %c3 = arith.constant 3 : index
      %c0_63 = arith.constant 0 : index
      %c0_64 = arith.constant 0 : index
      %57 = vector.load %arg2[%c3, %c0_63, %c0_64] : memref<7x16x16xf32, #tpu.memory_space<vmem>>, vector<1x16x16xf32>
      %58 = vector.shape_cast %57 : vector<1x16x16xf32> to vector<16x16xf32>
      %cst_65 = arith.constant dense<0.000000e+00> : vector<16x16xf32>
      %59 = tpu.matmul %58, %18, %cst_65 {dimension_numbers = #tpu.dot_dimension_numbers<[1], [0], [0], [1], [0, 0, 1, 1], [], []>} : vector<16x16xf32>, vector<16x16xf32>, vector<16x16xf32> -> vector<16x16xf32>
      %cst_66 = arith.constant dense<0.000000e+00> : vector<16x16xf32>
      %60 = tpu.matmul %58, %19, %cst_66 {dimension_numbers = #tpu.dot_dimension_numbers<[1], [0], [0], [1], [0, 0, 1, 1], [], []>} : vector<16x16xf32>, vector<16x16xf32>, vector<16x16xf32> -> vector<16x16xf32>
      %c0_67 = arith.constant 0 : index
      %c3_68 = arith.constant 3 : index
      %c0_69 = arith.constant 0 : index
      %c0_70 = arith.constant 0 : index
      %61 = vector.load %arg3[%c0_67, %c3_68, %c0_69, %c0_70] : memref<2x7x16x16xf32, #tpu.memory_space<vmem>>, vector<1x1x16x16xf32>
      %62 = vector.shape_cast %61 : vector<1x1x16x16xf32> to vector<16x16xf32>
      %cst_71 = arith.constant dense<0.000000e+00> : vector<16x16xf32>
      %63 = tpu.matmul %59, %62, %cst_71 {dimension_numbers = #tpu.dot_dimension_numbers<[1], [0], [0], [1], [0, 0, 1, 1], [], []>} : vector<16x16xf32>, vector<16x16xf32>, vector<16x16xf32> -> vector<16x16xf32>
      %64 = arith.addf %56, %63 : vector<16x16xf32>
      %c1_72 = arith.constant 1 : index
      %c3_73 = arith.constant 3 : index
      %c0_74 = arith.constant 0 : index
      %c0_75 = arith.constant 0 : index
      %65 = vector.load %arg3[%c1_72, %c3_73, %c0_74, %c0_75] : memref<2x7x16x16xf32, #tpu.memory_space<vmem>>, vector<1x1x16x16xf32>
      %66 = vector.shape_cast %65 : vector<1x1x16x16xf32> to vector<16x16xf32>
      %cst_76 = arith.constant dense<0.000000e+00> : vector<16x16xf32>
      %67 = tpu.matmul %60, %66, %cst_76 {dimension_numbers = #tpu.dot_dimension_numbers<[1], [0], [0], [1], [0, 0, 1, 1], [], []>} : vector<16x16xf32>, vector<16x16xf32>, vector<16x16xf32> -> vector<16x16xf32>
      %68 = arith.addf %64, %67 : vector<16x16xf32>
      %c4 = arith.constant 4 : index
      %c0_77 = arith.constant 0 : index
      %c0_78 = arith.constant 0 : index
      %69 = vector.load %arg2[%c4, %c0_77, %c0_78] : memref<7x16x16xf32, #tpu.memory_space<vmem>>, vector<1x16x16xf32>
      %70 = vector.shape_cast %69 : vector<1x16x16xf32> to vector<16x16xf32>
      %cst_79 = arith.constant dense<0.000000e+00> : vector<16x16xf32>
      %71 = tpu.matmul %70, %18, %cst_79 {dimension_numbers = #tpu.dot_dimension_numbers<[1], [0], [0], [1], [0, 0, 1, 1], [], []>} : vector<16x16xf32>, vector<16x16xf32>, vector<16x16xf32> -> vector<16x16xf32>
      %cst_80 = arith.constant dense<0.000000e+00> : vector<16x16xf32>
      %72 = tpu.matmul %70, %19, %cst_80 {dimension_numbers = #tpu.dot_dimension_numbers<[1], [0], [0], [1], [0, 0, 1, 1], [], []>} : vector<16x16xf32>, vector<16x16xf32>, vector<16x16xf32> -> vector<16x16xf32>
      %c0_81 = arith.constant 0 : index
      %c4_82 = arith.constant 4 : index
      %c0_83 = arith.constant 0 : index
      %c0_84 = arith.constant 0 : index
      %73 = vector.load %arg3[%c0_81, %c4_82, %c0_83, %c0_84] : memref<2x7x16x16xf32, #tpu.memory_space<vmem>>, vector<1x1x16x16xf32>
      %74 = vector.shape_cast %73 : vector<1x1x16x16xf32> to vector<16x16xf32>
      %cst_85 = arith.constant dense<0.000000e+00> : vector<16x16xf32>
      %75 = tpu.matmul %71, %74, %cst_85 {dimension_numbers = #tpu.dot_dimension_numbers<[1], [0], [0], [1], [0, 0, 1, 1], [], []>} : vector<16x16xf32>, vector<16x16xf32>, vector<16x16xf32> -> vector<16x16xf32>
      %76 = arith.addf %68, %75 : vector<16x16xf32>
      %c1_86 = arith.constant 1 : index
      %c4_87 = arith.constant 4 : index
      %c0_88 = arith.constant 0 : index
      %c0_89 = arith.constant 0 : index
      %77 = vector.load %arg3[%c1_86, %c4_87, %c0_88, %c0_89] : memref<2x7x16x16xf32, #tpu.memory_space<vmem>>, vector<1x1x16x16xf32>
      %78 = vector.shape_cast %77 : vector<1x1x16x16xf32> to vector<16x16xf32>
      %cst_90 = arith.constant dense<0.000000e+00> : vector<16x16xf32>
      %79 = tpu.matmul %72, %78, %cst_90 {dimension_numbers = #tpu.dot_dimension_numbers<[1], [0], [0], [1], [0, 0, 1, 1], [], []>} : vector<16x16xf32>, vector<16x16xf32>, vector<16x16xf32> -> vector<16x16xf32>
      %80 = arith.addf %76, %79 : vector<16x16xf32>
      %c5 = arith.constant 5 : index
      %c0_91 = arith.constant 0 : index
      %c0_92 = arith.constant 0 : index
      %81 = vector.load %arg2[%c5, %c0_91, %c0_92] : memref<7x16x16xf32, #tpu.memory_space<vmem>>, vector<1x16x16xf32>
      %82 = vector.shape_cast %81 : vector<1x16x16xf32> to vector<16x16xf32>
      %cst_93 = arith.constant dense<0.000000e+00> : vector<16x16xf32>
      %83 = tpu.matmul %82, %18, %cst_93 {dimension_numbers = #tpu.dot_dimension_numbers<[1], [0], [0], [1], [0, 0, 1, 1], [], []>} : vector<16x16xf32>, vector<16x16xf32>, vector<16x16xf32> -> vector<16x16xf32>
      %cst_94 = arith.constant dense<0.000000e+00> : vector<16x16xf32>
      %84 = tpu.matmul %82, %19, %cst_94 {dimension_numbers = #tpu.dot_dimension_numbers<[1], [0], [0], [1], [0, 0, 1, 1], [], []>} : vector<16x16xf32>, vector<16x16xf32>, vector<16x16xf32> -> vector<16x16xf32>
      %c0_95 = arith.constant 0 : index
      %c5_96 = arith.constant 5 : index
      %c0_97 = arith.constant 0 : index
      %c0_98 = arith.constant 0 : index
      %85 = vector.load %arg3[%c0_95, %c5_96, %c0_97, %c0_98] : memref<2x7x16x16xf32, #tpu.memory_space<vmem>>, vector<1x1x16x16xf32>
      %86 = vector.shape_cast %85 : vector<1x1x16x16xf32> to vector<16x16xf32>
      %cst_99 = arith.constant dense<0.000000e+00> : vector<16x16xf32>
      %87 = tpu.matmul %83, %86, %cst_99 {dimension_numbers = #tpu.dot_dimension_numbers<[1], [0], [0], [1], [0, 0, 1, 1], [], []>} : vector<16x16xf32>, vector<16x16xf32>, vector<16x16xf32> -> vector<16x16xf32>
      %88 = arith.addf %80, %87 : vector<16x16xf32>
      %c1_100 = arith.constant 1 : index
      %c5_101 = arith.constant 5 : index
      %c0_102 = arith.constant 0 : index
      %c0_103 = arith.constant 0 : index
      %89 = vector.load %arg3[%c1_100, %c5_101, %c0_102, %c0_103] : memref<2x7x16x16xf32, #tpu.memory_space<vmem>>, vector<1x1x16x16xf32>
      %90 = vector.shape_cast %89 : vector<1x1x16x16xf32> to vector<16x16xf32>
      %cst_104 = arith.constant dense<0.000000e+00> : vector<16x16xf32>
      %91 = tpu.matmul %84, %90, %cst_104 {dimension_numbers = #tpu.dot_dimension_numbers<[1], [0], [0], [1], [0, 0, 1, 1], [], []>} : vector<16x16xf32>, vector<16x16xf32>, vector<16x16xf32> -> vector<16x16xf32>
      %92 = arith.addf %88, %91 : vector<16x16xf32>
      %c6 = arith.constant 6 : index
      %c0_105 = arith.constant 0 : index
      %c0_106 = arith.constant 0 : index
      %93 = vector.load %arg2[%c6, %c0_105, %c0_106] : memref<7x16x16xf32, #tpu.memory_space<vmem>>, vector<1x16x16xf32>
      %94 = vector.shape_cast %93 : vector<1x16x16xf32> to vector<16x16xf32>
      %cst_107 = arith.constant dense<0.000000e+00> : vector<16x16xf32>
      %95 = tpu.matmul %94, %18, %cst_107 {dimension_numbers = #tpu.dot_dimension_numbers<[1], [0], [0], [1], [0, 0, 1, 1], [], []>} : vector<16x16xf32>, vector<16x16xf32>, vector<16x16xf32> -> vector<16x16xf32>
      %cst_108 = arith.constant dense<0.000000e+00> : vector<16x16xf32>
      %96 = tpu.matmul %94, %19, %cst_108 {dimension_numbers = #tpu.dot_dimension_numbers<[1], [0], [0], [1], [0, 0, 1, 1], [], []>} : vector<16x16xf32>, vector<16x16xf32>, vector<16x16xf32> -> vector<16x16xf32>
      %c0_109 = arith.constant 0 : index
      %c6_110 = arith.constant 6 : index
      %c0_111 = arith.constant 0 : index
      %c0_112 = arith.constant 0 : index
      %97 = vector.load %arg3[%c0_109, %c6_110, %c0_111, %c0_112] : memref<2x7x16x16xf32, #tpu.memory_space<vmem>>, vector<1x1x16x16xf32>
      %98 = vector.shape_cast %97 : vector<1x1x16x16xf32> to vector<16x16xf32>
      %cst_113 = arith.constant dense<0.000000e+00> : vector<16x16xf32>
      %99 = tpu.matmul %95, %98, %cst_113 {dimension_numbers = #tpu.dot_dimension_numbers<[1], [0], [0], [1], [0, 0, 1, 1], [], []>} : vector<16x16xf32>, vector<16x16xf32>, vector<16x16xf32> -> vector<16x16xf32>
      %100 = arith.addf %92, %99 : vector<16x16xf32>
      %c1_114 = arith.constant 1 : index
      %c6_115 = arith.constant 6 : index
      %c0_116 = arith.constant 0 : index
      %c0_117 = arith.constant 0 : index
      %101 = vector.load %arg3[%c1_114, %c6_115, %c0_116, %c0_117] : memref<2x7x16x16xf32, #tpu.memory_space<vmem>>, vector<1x1x16x16xf32>
      %102 = vector.shape_cast %101 : vector<1x1x16x16xf32> to vector<16x16xf32>
      %cst_118 = arith.constant dense<0.000000e+00> : vector<16x16xf32>
      %103 = tpu.matmul %96, %102, %cst_118 {dimension_numbers = #tpu.dot_dimension_numbers<[1], [0], [0], [1], [0, 0, 1, 1], [], []>} : vector<16x16xf32>, vector<16x16xf32>, vector<16x16xf32> -> vector<16x16xf32>
      %104 = arith.addf %100, %103 : vector<16x16xf32>
      %105 = arith.negf %104 : vector<16x16xf32>
      %106 = math.exp %105 : vector<16x16xf32>
      %cst_119 = arith.constant 1.000000e+00 : f32
      %107 = vector.broadcast %cst_119 : f32 to vector<16x16xf32>
      %108 = arith.addf %107, %106 : vector<16x16xf32>
      %109 = arith.divf %107, %108 : vector<16x16xf32>
      %c0_120 = arith.constant 0 : index
      %c0_121 = arith.constant 0 : index
      %c0_122 = arith.constant 0 : index
      %c0_123 = arith.constant 0 : index
      %110 = vector.load %arg5[%c0_120, %c0_121, %c0_122, %c0_123] : memref<1x1x16x16xf32, #tpu.memory_space<vmem>>, vector<1x1x16x16xf32>
      %111 = vector.shape_cast %110 : vector<1x1x16x16xf32> to vector<16x16xf32>
      %112 = vector.shape_cast %109 : vector<16x16xf32> to vector<1x1x16x16xf32>
      tpu.vector_store %arg5[%c0_120, %c0_121, %c0_122, %c0_123], %112 {strides = array<i32>} : memref<1x1x16x16xf32, #tpu.memory_space<vmem>>, vector<1x1x16x16xf32>,
    } else {
    }
    return
  }
  func.func @transform_0(%arg0: i32, %arg1: i32) -> (i32, i32, i32) {
    %c0_i32 = arith.constant 0 : i32
    %c0_i32_0 = arith.constant 0 : i32
    %c0_i32_1 = arith.constant 0 : i32
    %c0_i32_2 = arith.constant 0 : i32
    return %c0_i32, %c0_i32_0, %c0_i32_1 : i32, i32, i32
  }
  func.func @transform_1(%arg0: i32, %arg1: i32) -> (i32, i32, i32, i32) {
    %c0_i32 = arith.constant 0 : i32
    %c0_i32_0 = arith.constant 0 : i32
    %c0_i32_1 = arith.constant 0 : i32
    %c0_i32_2 = arith.constant 0 : i32
    %c0_i32_3 = arith.constant 0 : i32
    return %c0_i32, %c0_i32_0, %c0_i32_1, %c0_i32_2 : i32, i32, i32, i32
  }
  func.func @transform_2(%arg0: i32, %arg1: i32) -> (i32, i32, i32, i32) {
    %c0_i32 = arith.constant 0 : i32
    %c0_i32_0 = arith.constant 0 : i32
    %c0_i32_1 = arith.constant 0 : i32
    return %arg0, %arg1, %c0_i32, %c0_i32_0 : i32, i32, i32, i32
  }
  func.func @transform_3(%arg0: i32, %arg1: i32) -> (i32, i32, i32, i32) {
    %c0_i32 = arith.constant 0 : i32
    %c0_i32_0 = arith.constant 0 : i32
    %c0_i32_1 = arith.constant 0 : i32
    %c0_i32_2 = arith.constant 0 : i32
    return %arg0, %c0_i32, %c0_i32_0, %c0_i32_1 : i32, i32, i32, i32
  }
}

</mosaic_0001>

<llo_original>
// kernel: tpu_custom_call.1
$region0: #{tpu_custom_call.1}
  #allocation0 [shape = 'u32[]', space=smem, size = 0x4, offset = 0x4, fixed_abs, tag = 'smem constant byte address 0x4 - core index']
  #allocation1 [shape = 'u32[144,128]{1,0:T(1,128)}', space=vmem, size = 0x12000, scoped, tag = 'internal scratch']
  #allocation2 [shape = 'f32[16,16]{1,0:T(8,128)}', space=vmem, size = 0x2000, scoped, tag = 'scratch operand']
  #allocation3 [shape = 'f32[16,16]{1,0:T(8,128)}', space=vmem, size = 0x2000, scoped, tag = 'scratch operand']
  %s0 = inlined_call_operand.hbm [shape: f32[7,16,16], index: 0, kind: input, shape index: {}]
  %s1 = inlined_call_operand.hbm [shape: f32[2,7,16,16], index: 1, kind: input, shape index: {}]
  %s2 = inlined_call_operand.hbm [shape: f32[2,8,16,16], index: 2, kind: input, shape index: {}]
  %s3 = inlined_call_operand.hbm [shape: f32[2,1,16,16], index: 3, kind: output, shape index: {}]
  %s4 = sld [smem:[#allocation0]]
  $region65: #{tpu_custom_call.1} parent=0
    _
  %s6 = ssub.s32 1, %s4
  %s7 = scalar_select 0, %s6, %s4
  $region1: #{tpu_custom_call.1} parent=0
    #allocation4 [shape = 'u8[57344]{0}', space=vmem, size = 0xe000, scoped, tag = 'input window, operand 0, single buffered']
    #allocation5 [shape = 's32[2]{0}', space=sflag, size = 0x8, scoped, tag = 'scoped memory for tpu_custom_call.1']
    #allocation6 [shape = 's32[2]{0}', space=sflag, size = 0x8, scoped, tag = 'scoped memory for tpu_custom_call.1']
    #allocation7 [shape = 'u8[114688]{0}', space=vmem, size = 0x1c000, scoped, tag = 'input window, operand 1, single buffered']
    #allocation8 [shape = 's32[1]{0}', space=sflag, size = 0x4, scoped, tag = 'scoped memory for tpu_custom_call.1']
    #allocation9 [shape = 'u8[65536]{0}', space=vmem, size = 0x10000, scoped, tag = 'input window, operand 2']
    #allocation10 [shape = 'u8[16384]{0}', space=vmem, size = 0x4000, scoped, tag = 'output window, operand 0']
    %8 = vsyncpa [#allocation5], 0
    %9 = vsyncpa [#allocation8], 0
    %10 = vsyncpa [#allocation6], 0
    %s11 = scalar_lea.sflag [#allocation6], 1
    %12 = vsyncpa %s11, 0
    loop: start=0, step=1, limit=6
    $region2: #{tpu_custom_call.1} parent=1 // loop_pre_header
      _
    $region3: #{tpu_custom_call.1} parent=1 // loop_header
      %s14 = sphi 0, %s18
      %p15 = scmp.ge.s32.totalorder %s14, 6
      %s21 = sphi 0, %s33
      %s22 = sphi 0, %s29
      %s23 = sphi 0, %s21
      %s24 = sphi 0, %s22
      %s25 = sphi 0, %s23
      %s26 = sphi 0, %s24
      %s34 = sphi 0, %s34
      %s36 = sphi 0, %s34
      %s37 = sphi 0, %s36
      %s51 = sphi 0, %s37
      %s55 = sphi 0, %s55
      %s57 = sphi 0, %s55
      %s58 = sphi 0, %s57
      %s72 = sphi 0, %s58
      %s80 = sphi 0, %s82
      %s83 = sphi 0, %s80
      %s84 = sphi 0, %s83
      %s100 = sphi 0, %s84
      %s106 = sphi 0, %s108
      %s109 = sphi 0, %s106
      %s110 = sphi 0, %s109
      %s126 = sphi 0, %s110
    $region4: #{tpu_custom_call.1} parent=1 // loop_header_branch
      %17 = sbr.rel (%p15) target = $region8
    $region5: #{tpu_custom_call.1} parent=1 // loop_body
      %s19 = ssub.s32 %s14, 1
      %s20 = ssub.s32 %s14, 2
      %s27 = sadd.s32 1, %s22
      %p28 = scmp.ge.s32.totalorder %s27, 2
      %s29 = scalar_select %p28, 0, %s27
      %s30 = sadd.s32 1, %s21
      %s31 = scalar_select %p28, %s30, %s21
      %p32 = scmp.ge.s32.totalorder %s31, 2
      %s33 = scalar_select %p32, 0, %s31
      %s35 = sadd.s32 %s34, 1
      %p38 = scmp.eq.s32.totalorder %s14, 3
      %p39 = scmp.ne.s32.totalorder %s34, %s36
      %p40 = scmp.eq.s32.totalorder %s14, 0
      %p41 = por %p39, %p40
      %p42 = scmp.ne.s32.totalorder %s34, %s36
      %p43 = scmp.eq.s32.totalorder %s19, 3
      %p44 = por %p42, %p43
      %p45 = scmp.ne.s32.totalorder %s36, %s37
      %p46 = scmp.eq.s32.totalorder %s19, 0
      %p47 = por %p45, %p46
      %p48 = scmp.ne.s32.totalorder %s36, %s37
      %p49 = scmp.eq.s32.totalorder %s20, 3
      %p50 = por %p48, %p49
      %p52 = scmp.ne.s32.totalorder %s37, %s51
      %p53 = scmp.eq.s32.totalorder %s20, 0
      %p54 = por %p52, %p53
      %s56 = sadd.s32 %s55, 1
      %p59 = scmp.eq.s32.totalorder %s14, 3
      %p60 = scmp.ne.s32.totalorder %s55, %s57
      %p61 = scmp.eq.s32.totalorder %s14, 0
      %p62 = por %p60, %p61
      %p63 = scmp.ne.s32.totalorder %s55, %s57
      %p64 = scmp.eq.s32.totalorder %s19, 3
      %p65 = por %p63, %p64
      %p66 = scmp.ne.s32.totalorder %s57, %s58
      %p67 = scmp.eq.s32.totalorder %s19, 0
      %p68 = por %p66, %p67
      %p69 = scmp.ne.s32.totalorder %s57, %s58
      %p70 = scmp.eq.s32.totalorder %s20, 3
      %p71 = por %p69, %p70
      %p73 = scmp.ne.s32.totalorder %s58, %s72
      %p74 = scmp.eq.s32.totalorder %s20, 0
      %p75 = por %p73, %p74
      %s76 = ssub.s32 %s21, %s33
      %s77 = ssub.s32 %s22, %s29
      %s78 = sor.u32 %s76, %s77
      %p79 = scmp.eq.s32.totalorder %s78, 0
      %s81 = sadd.s32 %s80, 1
      %s82 = scalar_select %p79, %s80, %s81
      %p85 = pneg %p79
      %p86 = scmp.eq.s32.totalorder %s14, 3
      %p87 = por %p85, %p86
      %p88 = scmp.ne.s32.totalorder %s80, %s83
      %p89 = scmp.eq.s32.totalorder %s14, 0
      %p90 = por %p88, %p89
      %p91 = scmp.ne.s32.totalorder %s80, %s83
      %p92 = scmp.eq.s32.totalorder %s19, 3
      %p93 = por %p91, %p92
      %p94 = scmp.ne.s32.totalorder %s83, %s84
      %p95 = scmp.eq.s32.totalorder %s19, 0
      %p96 = por %p94, %p95
      %p97 = scmp.ne.s32.totalorder %s83, %s84
      %p98 = scmp.eq.s32.totalorder %s20, 3
      %p99 = por %p97, %p98
      %p101 = scmp.ne.s32.totalorder %s84, %s100
      %p102 = scmp.eq.s32.totalorder %s20, 0
      %p103 = por %p101, %p102
      %s104 = ssub.s32 %s21, %s33
      %p105 = scmp.eq.s32.totalorder %s104, 0
      %s107 = sadd.s32 %s106, 1
      %s108 = scalar_select %p105, %s106, %s107
      %p111 = pneg %p105
      %p112 = scmp.eq.s32.totalorder %s14, 3
      %p113 = por %p111, %p112
      %p114 = scmp.ne.s32.totalorder %s106, %s109
      %p115 = scmp.eq.s32.totalorder %s14, 0
      %p116 = por %p114, %p115
      %p117 = scmp.ne.s32.totalorder %s106, %s109
      %p118 = scmp.eq.s32.totalorder %s19, 3
      %p119 = por %p117, %p118
      %p120 = scmp.ne.s32.totalorder %s109, %s110
      %p121 = scmp.eq.s32.totalorder %s19, 0
      %p122 = por %p120, %p121
      %p123 = scmp.ne.s32.totalorder %s109, %s110
      %p124 = scmp.eq.s32.totalorder %s20, 3
      %p125 = por %p123, %p124
      %p127 = scmp.ne.s32.totalorder %s110, %s126
      %p128 = scmp.eq.s32.totalorder %s20, 0
      %p129 = por %p127, %p128
      %p130 = scmp.le.s32.totalorder 1, %s14
      %p131 = scmp.lt.s32.totalorder %s14, 5
      %p132 = pnand %p130, %p131
      %p133 = pneg %p132
      // Predicated region
      $region9: #{tpu_custom_call.1} parent=5 // pred_check
        _
      $region10: #{tpu_custom_call.1} parent=5 // pred_check_branch
        %135 = sbr.rel (%p132) target = $region12
      $region11: #{tpu_custom_call.1} parent=5 // pred_region
        %s136 = ssub.s32 %s14, 1
        // Predicated region
        $region13: #{tpu_custom_call.1} parent=11 // pred_check
          %p137 = pneg %p47
        $region14: #{tpu_custom_call.1} parent=11 // pred_check_branch
          %139 = sbr.rel (%p137) target = $region16
        $region15: #{tpu_custom_call.1} parent=11 // pred_region
          %s141 = ssub.s32 1792, 1792
          %142 = vsyncadd [#allocation5], %s141
          %s143 = sshll.u32 [#allocation4], 4
          %s144 = int_to_ptr.vmem [resolvable:$true] %s143
          %149 = dma.hbm_to_vmem [thread:$0]  %s0, 1792, %s144, [#allocation5], 128, 128, 8
        $region16: #{tpu_custom_call.1} parent=11 // pred_fallthru
          _
        // Predicated region
        $region17: #{tpu_custom_call.1} parent=11 // pred_check
          %p150 = pneg %p68
        $region18: #{tpu_custom_call.1} parent=11 // pred_check_branch
          %152 = sbr.rel (%p150) target = $region20
        $region19: #{tpu_custom_call.1} parent=11 // pred_region
          %s154 = ssub.s32 3584, 3584
          %155 = vsyncadd [#allocation8], %s154
          %s156 = sshll.u32 [#allocation7], 4
          %s157 = int_to_ptr.vmem [resolvable:$true] %s156
          %162 = dma.hbm_to_vmem [thread:$0]  %s1, 3584, %s157, [#allocation8], 128, 128, 8
        $region20: #{tpu_custom_call.1} parent=11 // pred_fallthru
          _
      $region12: #{tpu_custom_call.1} parent=5 // pred_fallthru
        _
      %p163 = scmp.lt.s32.totalorder %s14, 4
      // Predicated region
      $region21: #{tpu_custom_call.1} parent=5 // pred_check
        %p164 = pneg %p163
      $region22: #{tpu_custom_call.1} parent=5 // pred_check_branch
        %166 = sbr.rel (%p164) target = $region24
      $region23: #{tpu_custom_call.1} parent=5 // pred_region
        // Predicated region
        $region25: #{tpu_custom_call.1} parent=23 // pred_check
          %p167 = pneg %p90
        $region26: #{tpu_custom_call.1} parent=23 // pred_check_branch
          %169 = sbr.rel (%p167) target = $region28
        $region27: #{tpu_custom_call.1} parent=23 // pred_region
          %s170 = sand.u32 %s14, 1
          %s171 = scalar_lea.sflag [#allocation5], %s170
          %s172 = sand.u32 %s80, 1
          %s173 = smul.addr %s172, 64
          %s174 = scalar_lea.vmem [#allocation9], %s173
          %s175 = smul.u32 4, %s22
          %s177 = ssub.s32 1024, 1024
          %178 = vsyncadd %s171, %s177
          %s179 = smul.addr %s175, 2
          %s180 = smul.addr %s21, 16
          %s181 = sadd.s32 %s179, %s180
          %s182 = smul.addr %s181, 128
          %s183 = scalar_lea.hbm %s2, %s182
          %s184 = sshll.u32 %s174, 4
          %s185 = int_to_ptr.vmem [resolvable:$true] %s184
          %190 = dma.hbm_to_vmem [thread:$0]  %s183, 1024, %s185, %s171, 128, 128, 8
        $region28: #{tpu_custom_call.1} parent=23 // pred_fallthru
          _
      $region24: #{tpu_custom_call.1} parent=5 // pred_fallthru
        _
      %p191 = scmp.le.s32.totalorder 1, %s14
      %p192 = scmp.lt.s32.totalorder %s14, 5
      %p193 = pnand %p191, %p192
      %p194 = pneg %p193
      // Predicated region
      $region29: #{tpu_custom_call.1} parent=5 // pred_check
        _
      $region30: #{tpu_custom_call.1} parent=5 // pred_check_branch
        %196 = sbr.rel (%p193) target = $region32
      $region31: #{tpu_custom_call.1} parent=5 // pred_region
        %s197 = ssub.s32 %s14, 1
        // Predicated region
        $region33: #{tpu_custom_call.1} parent=31 // pred_check
          %p198 = pneg %p47
        $region34: #{tpu_custom_call.1} parent=31 // pred_check_branch
          %200 = sbr.rel (%p198) target = $region36
        $region35: #{tpu_custom_call.1} parent=31 // pred_region
          %201 = dma.done [#allocation5], 1792
        $region36: #{tpu_custom_call.1} parent=31 // pred_fallthru
          _
        // Predicated region
        $region37: #{tpu_custom_call.1} parent=31 // pred_check
          %p202 = pneg %p68
        $region38: #{tpu_custom_call.1} parent=31 // pred_check_branch
          %204 = sbr.rel (%p202) target = $region40
        $region39: #{tpu_custom_call.1} parent=31 // pred_region
          %205 = dma.done [#allocation8], 3584
        $region40: #{tpu_custom_call.1} parent=31 // pred_fallthru
          _
        %s206 = sand.u32 %s19, 1
        %s207 = scalar_lea.sflag [#allocation5], %s206
        %s208 = sand.u32 %s83, 1
        %s209 = smul.addr %s208, 64
        %s210 = scalar_lea.vmem [#allocation9], %s209
        // Predicated region
        $region41: #{tpu_custom_call.1} parent=31 // pred_check
          %p211 = pneg %p96
        $region42: #{tpu_custom_call.1} parent=31 // pred_check_branch
          %213 = sbr.rel (%p211) target = $region44
        $region43: #{tpu_custom_call.1} parent=31 // pred_region
          %214 = dma.done %s207, 1024
        $region44: #{tpu_custom_call.1} parent=31 // pred_fallthru
          _
        %p215 = pneg %p47
        %p216 = pneg %p44
        %p217 = pneg %p68
        %p218 = pneg %p65
        %s219 = sand.u32 %s19, 1
        %s220 = scalar_lea.sflag [#allocation5], %s219
        %s221 = sand.u32 %s83, 1
        %s222 = smul.addr %s221, 64
        %s223 = scalar_lea.vmem [#allocation9], %s222
        %p224 = pneg %p96
        %p225 = pneg %p93
        %p226 = pneg %p122
        %p227 = pneg %p119
        %s228 = sand.u32 %s109, 1
        %s229 = scalar_lea.sflag [#allocation6], %s228
        %s230 = sand.u32 %s109, 1
        %s231 = smul.addr %s230, 16
        %s232 = scalar_lea.vmem [#allocation10], %s231
        %s233 = smul.u32 4, %s24
        %p234 = scmp.eq.s32.totalorder %s24, 0
        // Predicated region
        $region45: #{tpu_custom_call.1} parent=31 // pred_check
          %p235 = pneg %p234
        $region46: #{tpu_custom_call.1} parent=31 // pred_check_branch
          %237 = sbr.rel (%p235) target = $region48
        $region47: #{tpu_custom_call.1} parent=31 // pred_region
          %vm238 = vcmask 130048
          %239 = vst.msk [vmem:[#allocation2] sm:$0xff] %vm238, 0.0
          %240 = vst.msk [vmem:[#allocation2 + $0x8] sm:$0xff] %vm238, 0.0
          %241 = vst.msk [vmem:[#allocation3] sm:$0xff] %vm238, -inf
          %242 = vst.msk [vmem:[#allocation3 + $0x8] sm:$0xff] %vm238, -inf
        $region48: #{tpu_custom_call.1} parent=31 // pred_fallthru
          _
        %v243 = vld [vmem:[%s210] sm:$0xff]
        %v244 = vld [vmem:[%s210 + $0x8] sm:$0xff]
        %v245 = vld [vmem:[%s210 + $0x10] sm:$0xff]
        %v246 = vld [vmem:[%s210 + $0x18] sm:$0xff]
        %v247 = vld [vmem:[%s210 + $0x20] sm:$0xff]
        %v248 = vld [vmem:[%s210 + $0x28] sm:$0xff]
        %v249 = vld [vmem:[%s210 + $0x30] sm:$0xff]
        %v250 = vld [vmem:[%s210 + $0x38] sm:$0xff]
        %v251 = vld [vmem:[#allocation2] sm:$0xff]
        %v252 = vld [vmem:[#allocation2 + $0x8] sm:$0xff]
        %vm253 = vcmask 130048
        %v254 = vsel %vm253, %v243, 0.0
        %v255 = vsel %vm253, %v245, 0.0
        %v256 = vadd.f32 %v254, %v255
        %v257 = vsel %vm253, %v247, 0.0
        %v258 = vadd.f32 %v256, %v257
        %v259 = vsel %vm253, %v249, 0.0
        %v260 = vadd.f32 %v258, %v259
        %v261 = vsel %vm253, %v244, 0.0
        %v262 = vsel %vm253, %v246, 0.0
        %v263 = vadd.f32 %v261, %v262
        %v264 = vsel %vm253, %v248, 0.0
        %v265 = vadd.f32 %v263, %v264
        %v266 = vsel %vm253, %v250, 0.0
        %v267 = vadd.f32 %v265, %v266
        %v268 = vadd.f32 %v251, %v260
        %v269 = vadd.f32 %v252, %v267
        %270 = vst.msk [vmem:[#allocation2] sm:$0xff] %vm253, %v268
        %271 = vst.msk [vmem:[#allocation2 + $0x8] sm:$0xff] %vm253, %v269
        %v272 = vld [vmem:[#allocation3] sm:$0xff]
        %v273 = vld [vmem:[#allocation3 + $0x8] sm:$0xff]
        %v274 = vsel %vm253, %v243, -inf
        %v275 = vsel %vm253, %v245, -inf
        %v276 = vsel %vm253, %v247, -inf
        %v277 = vmax.f32 %v274, %v276
        %v278 = vsel %vm253, %v249, -inf
        %v279 = vmax.f32 %v275, %v278
        %v280 = vmax.f32 %v277, %v279
        %v281 = vsel %vm253, %v244, -inf
        %v282 = vsel %vm253, %v246, -inf
        %v283 = vsel %vm253, %v248, -inf
        %v284 = vmax.f32 %v281, %v283
        %v285 = vsel %vm253, %v250, -inf
        %v286 = vmax.f32 %v282, %v285
        %v287 = vmax.f32 %v284, %v286
        %v288 = vmax.f32 %v272, %v280
        %v289 = vmax.f32 %v273, %v287
        %290 = vst.msk [vmem:[#allocation3] sm:$0xff] %vm253, %v288
        %291 = vst.msk [vmem:[#allocation3 + $0x8] sm:$0xff] %vm253, %v289
        %p292 = scmp.eq.s32.totalorder %s24, 1
        // Predicated region
        $region49: #{tpu_custom_call.1} parent=31 // pred_check
          %p293 = pneg %p292
        $region50: #{tpu_custom_call.1} parent=31 // pred_check_branch
          %295 = sbr.rel (%p293) target = $region52
        $region51: #{tpu_custom_call.1} parent=31 // pred_region
          %v296 = vld [vmem:[#allocation2] sm:$0xff]
          %v297 = vld [vmem:[#allocation2 + $0x8] sm:$0xff]
          %v298 = vmul.f32 %v296, 0.125
          %v299 = vmul.f32 %v297, 0.125
          %v300 = vld [vmem:[#allocation3] sm:$0xff]
          %v301 = vld [vmem:[#allocation3 + $0x8] sm:$0xff]
          %v302 = vld [vmem:[#allocation4] sm:$0xff]
          %v303 = vld [vmem:[#allocation4 + $0x8] sm:$0xff]
          %v305 = vsel %vm253, %v302, 0
          %v308 = vsel %vm253, %v303, 0
          %310 = vmatprep.subr.mxu0 0.0
          %311 = vmatpush1.msra.mxu0 %v298
          %312 = vmatprep.subr.mxu0 0.0
          %313 = vmatpush1.msra.mxu0 %v299
          %314 = vmatprep.subr.mxu0 0.0
          %315 = vmatpush1.msra.mxu0 0.0
          %316 = vmatprep.subr.mxu0 0.0
          %317 = vmatpush1.msra.mxu0 0.0
          %318 = vmatprep.subr.mxu0 0.0
          %319 = vmatpush1.msra.mxu0 0.0
          %320 = vmatprep.subr.mxu0 0.0
          %321 = vmatpush1.msra.mxu0 0.0
          %322 = vmatprep.subr.mxu0 0.0
          %323 = vmatpush1.msra.mxu0 0.0
          %324 = vmatprep.subr.mxu0 0.0
          %325 = vmatpush1.msra.mxu0 0.0
          %326 = vmatprep.subr.mxu0 0.0
          %327 = vmatpush1.msra.mxu0 0.0
          %328 = vmatprep.subr.mxu0 0.0
          %329 = vmatpush1.msra.mxu0 0.0
          %330 = vmatprep.subr.mxu0 0.0
          %331 = vmatpush1.msra.mxu0 0.0
          %332 = vmatprep.subr.mxu0 0.0
          %333 = vmatpush1.msra.mxu0 0.0
          %334 = vmatprep.subr.mxu0 0.0
          %335 = vmatpush1.msra.mxu0 0.0
          %336 = vmatprep.subr.mxu0 0.0
          %337 = vmatpush1.msra.mxu0 0.0
          %338 = vmatprep.subr.mxu0 0.0
          %339 = vmatpush1.msra.mxu0 0.0
          %340 = vmatprep.subr.mxu0 0.0
          %341 = vmatpush1.msra.mxu0 0.0
          %342 = vmatprep.subr.mxu0 0.0
          %343 = vmatpush1.msra.mxu0 0.0
          %344 = vmatprep.subr.mxu0 0.0
          %345 = vmatpush1.msra.mxu0 0.0
          %346 = vmatprep.subr.mxu0 0.0
          %347 = vmatpush1.msra.mxu0 0.0
          %348 = vmatprep.subr.mxu0 0.0
          %349 = vmatpush1.msra.mxu0 0.0
          %350 = vmatprep.subr.mxu0 0.0
          %351 = vmatpush1.msra.mxu0 0.0
          %352 = vmatprep.subr.mxu0 0.0
          %353 = vmatpush1.msra.mxu0 0.0
          %354 = vmatprep.subr.mxu0 0.0
          %355 = vmatpush1.msra.mxu0 0.0
          %356 = vmatprep.subr.mxu0 0.0
          %357 = vmatpush1.msra.mxu0 0.0
          %358 = vmatprep.subr.mxu0 0.0
          %359 = vmatpush1.msra.mxu0 0.0
          %360 = vmatprep.subr.mxu0 0.0
          %361 = vmatpush1.msra.mxu0 0.0
          %362 = vmatprep.subr.mxu0 0.0
          %363 = vmatpush1.msra.mxu0 0.0
          %364 = vmatprep.subr.mxu0 0.0
          %365 = vmatpush1.msra.mxu0 0.0
          %366 = vmatprep.subr.mxu0 0.0
          %367 = vmatpush1.msra.mxu0 0.0
          %368 = vmatprep.subr.mxu0 0.0
          %369 = vmatpush1.msra.mxu0 0.0
          %370 = vmatprep.subr.mxu0 0.0
          %371 = vmatpush1.msra.mxu0 0.0
          %372 = vmatprep.subr.mxu0 0.0
          %373 = vmatpush1.msra.mxu0 0.0
          %374 = vmatprep.mubr.f32.mxu0 0.0
          %375 = vmatmul.mubr.f32.gmra.mrb[0].mxu0 %v305
          %v376 = vpop.f32.mrb[0].mxu0
          %v377 = vadd.f32 0.0, %v376
          %v378 = vpop.f32.mrb[0].mxu0
          %379 = vmatprep.mubr.f32.mxu0 0.0
          %380 = vmatmul.mubr.f32.gmra.mrb[0].mxu0 %v308
          %v381 = vpop.f32.mrb[0].mxu0
          %v382 = vadd.f32 0.0, %v381
          %v383 = vpop.f32.mrb[0].mxu0
          %384 = vdwg.mxu0
          %385 = vmatprep.subr.mxu0 0.0
          %386 = vmatpush1.msra.mxu0 %v300
          %387 = vmatprep.subr.mxu0 0.0
          %388 = vmatpush1.msra.mxu0 %v301
          %389 = vmatprep.subr.mxu0 0.0
          %390 = vmatpush1.msra.mxu0 0.0
          %391 = vmatprep.subr.mxu0 0.0
          %392 = vmatpush1.msra.mxu0 0.0
          %393 = vmatprep.subr.mxu0 0.0
          %394 = vmatpush1.msra.mxu0 0.0
          %395 = vmatprep.subr.mxu0 0.0
          %396 = vmatpush1.msra.mxu0 0.0
          %397 = vmatprep.subr.mxu0 0.0
          %398 = vmatpush1.msra.mxu0 0.0
          %399 = vmatprep.subr.mxu0 0.0
          %400 = vmatpush1.msra.mxu0 0.0
          %401 = vmatprep.subr.mxu0 0.0
          %402 = vmatpush1.msra.mxu0 0.0
          %403 = vmatprep.subr.mxu0 0.0
          %404 = vmatpush1.msra.mxu0 0.0
          %405 = vmatprep.subr.mxu0 0.0
          %406 = vmatpush1.msra.mxu0 0.0
          %407 = vmatprep.subr.mxu0 0.0
          %408 = vmatpush1.msra.mxu0 0.0
          %409 = vmatprep.subr.mxu0 0.0
          %410 = vmatpush1.msra.mxu0 0.0
          %411 = vmatprep.subr.mxu0 0.0
          %412 = vmatpush1.msra.mxu0 0.0
          %413 = vmatprep.subr.mxu0 0.0
          %414 = vmatpush1.msra.mxu0 0.0
          %415 = vmatprep.subr.mxu0 0.0
          %416 = vmatpush1.msra.mxu0 0.0
          %417 = vmatprep.subr.mxu0 0.0
          %418 = vmatpush1.msra.mxu0 0.0
          %419 = vmatprep.subr.mxu0 0.0
          %420 = vmatpush1.msra.mxu0 0.0
          %421 = vmatprep.subr.mxu0 0.0
          %422 = vmatpush1.msra.mxu0 0.0
          %423 = vmatprep.subr.mxu0 0.0
          %424 = vmatpush1.msra.mxu0 0.0
          %425 = vmatprep.subr.mxu0 0.0
          %426 = vmatpush1.msra.mxu0 0.0
          %427 = vmatprep.subr.mxu0 0.0
          %428 = vmatpush1.msra.mxu0 0.0
          %429 = vmatprep.subr.mxu0 0.0
          %430 = vmatpush1.msra.mxu0 0.0
          %431 = vmatprep.subr.mxu0 0.0
          %432 = vmatpush1.msra.mxu0 0.0
          %433 = vmatprep.subr.mxu0 0.0
          %434 = vmatpush1.msra.mxu0 0.0
          %435 = vmatprep.subr.mxu0 0.0
          %436 = vmatpush1.msra.mxu0 0.0
          %437 = vmatprep.subr.mxu0 0.0
          %438 = vmatpush1.msra.mxu0 0.0
          %439 = vmatprep.subr.mxu0 0.0
          %440 = vmatpush1.msra.mxu0 0.0
          %441 = vmatprep.subr.mxu0 0.0
          %442 = vmatpush1.msra.mxu0 0.0
          %443 = vmatprep.subr.mxu0 0.0
          %444 = vmatpush1.msra.mxu0 0.0
          %445 = vmatprep.subr.mxu0 0.0
          %446 = vmatpush1.msra.mxu0 0.0
          %447 = vmatprep.subr.mxu0 0.0
          %448 = vmatpush1.msra.mxu0 0.0
          %449 = vmatprep.mubr.f32.mxu0 0.0
          %450 = vmatmul.mubr.f32.gmra.mrb[0].mxu0 %v305
          %v451 = vpop.f32.mrb[0].mxu0
          %v452 = vadd.f32 0.0, %v451
          %v453 = vpop.f32.mrb[0].mxu0
          %454 = vmatprep.mubr.f32.mxu0 0.0
          %455 = vmatmul.mubr.f32.gmra.mrb[0].mxu0 %v308
          %v456 = vpop.f32.mrb[0].mxu0
          %v457 = vadd.f32 0.0, %v456
          %v458 = vpop.f32.mrb[0].mxu0
          %459 = vdwg.mxu0
          %v460 = vld [vmem:[#allocation7] sm:$0xff]
          %v461 = vld [vmem:[#allocation7 + $0x8] sm:$0xff]
          %s462 = scalar_lea.vmem [#allocation7], 112
          %v463 = vld [vmem:[%s462] sm:$0xff]
          %v464 = vld [vmem:[%s462 + $0x8] sm:$0xff]
          %v466 = vsel %vm253, %v452, 0
          %v469 = vsel %vm253, %v457, 0
          %471 = vmatprep.subr.mxu0 0.0
          %472 = vmatpush1.msra.mxu0 %v463
          %473 = vmatprep.subr.mxu0 0.0
          %474 = vmatpush1.msra.mxu0 %v464
          %475 = vmatprep.subr.mxu0 0.0
          %476 = vmatpush1.msra.mxu0 0.0
          %477 = vmatprep.subr.mxu0 0.0
          %478 = vmatpush1.msra.mxu0 0.0
          %479 = vmatprep.subr.mxu0 0.0
          %480 = vmatpush1.msra.mxu0 0.0
          %481 = vmatprep.subr.mxu0 0.0
          %482 = vmatpush1.msra.mxu0 0.0
          %483 = vmatprep.subr.mxu0 0.0
          %484 = vmatpush1.msra.mxu0 0.0
          %485 = vmatprep.subr.mxu0 0.0
          %486 = vmatpush1.msra.mxu0 0.0
          %487 = vmatprep.subr.mxu0 0.0
          %488 = vmatpush1.msra.mxu0 0.0
          %489 = vmatprep.subr.mxu0 0.0
          %490 = vmatpush1.msra.mxu0 0.0
          %491 = vmatprep.subr.mxu0 0.0
          %492 = vmatpush1.msra.mxu0 0.0
          %493 = vmatprep.subr.mxu0 0.0
          %494 = vmatpush1.msra.mxu0 0.0
          %495 = vmatprep.subr.mxu0 0.0
          %496 = vmatpush1.msra.mxu0 0.0
          %497 = vmatprep.subr.mxu0 0.0
          %498 = vmatpush1.msra.mxu0 0.0
          %499 = vmatprep.subr.mxu0 0.0
          %500 = vmatpush1.msra.mxu0 0.0
          %501 = vmatprep.subr.mxu0 0.0
          %502 = vmatpush1.msra.mxu0 0.0
          %503 = vmatprep.subr.mxu0 0.0
          %504 = vmatpush1.msra.mxu0 0.0
          %505 = vmatprep.subr.mxu0 0.0
          %506 = vmatpush1.msra.mxu0 0.0
          %507 = vmatprep.subr.mxu0 0.0
          %508 = vmatpush1.msra.mxu0 0.0
          %509 = vmatprep.subr.mxu0 0.0
          %510 = vmatpush1.msra.mxu0 0.0
          %511 = vmatprep.subr.mxu0 0.0
          %512 = vmatpush1.msra.mxu0 0.0
          %513 = vmatprep.subr.mxu0 0.0
          %514 = vmatpush1.msra.mxu0 0.0
          %515 = vmatprep.subr.mxu0 0.0
          %516 = vmatpush1.msra.mxu0 0.0
          %517 = vmatprep.subr.mxu0 0.0
          %518 = vmatpush1.msra.mxu0 0.0
          %519 = vmatprep.subr.mxu0 0.0
          %520 = vmatpush1.msra.mxu0 0.0
          %521 = vmatprep.subr.mxu0 0.0
          %522 = vmatpush1.msra.mxu0 0.0
          %523 = vmatprep.subr.mxu0 0.0
          %524 = vmatpush1.msra.mxu0 0.0
          %525 = vmatprep.subr.mxu0 0.0
          %526 = vmatpush1.msra.mxu0 0.0
          %527 = vmatprep.subr.mxu0 0.0
          %528 = vmatpush1.msra.mxu0 0.0
          %529 = vmatprep.subr.mxu0 0.0
          %530 = vmatpush1.msra.mxu0 0.0
          %531 = vmatprep.subr.mxu0 0.0
          %532 = vmatpush1.msra.mxu0 0.0
          %533 = vmatprep.subr.mxu0 0.0
          %534 = vmatpush1.msra.mxu0 0.0
          %535 = vmatprep.mubr.f32.mxu0 0.0
          %536 = vmatmul.mubr.f32.gmra.mrb[0].mxu0 %v466
          %v537 = vpop.f32.mrb[0].mxu0
          %v538 = vadd.f32 0.0, %v537
          %v539 = vpop.f32.mrb[0].mxu0
          %540 = vmatprep.mubr.f32.mxu0 0.0
          %541 = vmatmul.mubr.f32.gmra.mrb[0].mxu0 %v469
          %v542 = vpop.f32.mrb[0].mxu0
          %v543 = vadd.f32 0.0, %v542
          %v544 = vpop.f32.mrb[0].mxu0
          %545 = vdwg.mxu0
          %v547 = vsel %vm253, %v377, 0
          %v550 = vsel %vm253, %v382, 0
          %552 = vmatprep.subr.mxu0 0.0
          %553 = vmatpush1.msra.mxu0 %v460
          %554 = vmatprep.subr.mxu0 0.0
          %555 = vmatpush1.msra.mxu0 %v461
          %556 = vmatprep.subr.mxu0 0.0
          %557 = vmatpush1.msra.mxu0 0.0
          %558 = vmatprep.subr.mxu0 0.0
          %559 = vmatpush1.msra.mxu0 0.0
          %560 = vmatprep.subr.mxu0 0.0
          %561 = vmatpush1.msra.mxu0 0.0
          %562 = vmatprep.subr.mxu0 0.0
          %563 = vmatpush1.msra.mxu0 0.0
          %564 = vmatprep.subr.mxu0 0.0
          %565 = vmatpush1.msra.mxu0 0.0
          %566 = vmatprep.subr.mxu0 0.0
          %567 = vmatpush1.msra.mxu0 0.0
          %568 = vmatprep.subr.mxu0 0.0
          %569 = vmatpush1.msra.mxu0 0.0
          %570 = vmatprep.subr.mxu0 0.0
          %571 = vmatpush1.msra.mxu0 0.0
          %572 = vmatprep.subr.mxu0 0.0
          %573 = vmatpush1.msra.mxu0 0.0
          %574 = vmatprep.subr.mxu0 0.0
          %575 = vmatpush1.msra.mxu0 0.0
          %576 = vmatprep.subr.mxu0 0.0
          %577 = vmatpush1.msra.mxu0 0.0
          %578 = vmatprep.subr.mxu0 0.0
          %579 = vmatpush1.msra.mxu0 0.0
          %580 = vmatprep.subr.mxu0 0.0
          %581 = vmatpush1.msra.mxu0 0.0
          %582 = vmatprep.subr.mxu0 0.0
          %583 = vmatpush1.msra.mxu0 0.0
          %584 = vmatprep.subr.mxu0 0.0
          %585 = vmatpush1.msra.mxu0 0.0
          %586 = vmatprep.subr.mxu0 0.0
          %587 = vmatpush1.msra.mxu0 0.0
          %588 = vmatprep.subr.mxu0 0.0
          %589 = vmatpush1.msra.mxu0 0.0
          %590 = vmatprep.subr.mxu0 0.0
          %591 = vmatpush1.msra.mxu0 0.0
          %592 = vmatprep.subr.mxu0 0.0
          %593 = vmatpush1.msra.mxu0 0.0
          %594 = vmatprep.subr.mxu0 0.0
          %595 = vmatpush1.msra.mxu0 0.0
          %596 = vmatprep.subr.mxu0 0.0
          %597 = vmatpush1.msra.mxu0 0.0
          %598 = vmatprep.subr.mxu0 0.0
          %599 = vmatpush1.msra.mxu0 0.0
          %600 = vmatprep.subr.mxu0 0.0
          %601 = vmatpush1.msra.mxu0 0.0
          %602 = vmatprep.subr.mxu0 0.0
          %603 = vmatpush1.msra.mxu0 0.0
          %604 = vmatprep.subr.mxu0 0.0
          %605 = vmatpush1.msra.mxu0 0.0
          %606 = vmatprep.subr.mxu0 0.0
          %607 = vmatpush1.msra.mxu0 0.0
          %608 = vmatprep.subr.mxu0 0.0
          %609 = vmatpush1.msra.mxu0 0.0
          %610 = vmatprep.subr.mxu0 0.0
          %611 = vmatpush1.msra.mxu0 0.0
          %612 = vmatprep.subr.mxu0 0.0
          %613 = vmatpush1.msra.mxu0 0.0
          %614 = vmatprep.subr.mxu0 0.0
          %615 = vmatpush1.msra.mxu0 0.0
          %616 = vmatprep.mubr.f32.mxu0 0.0
          %617 = vmatmul.mubr.f32.gmra.mrb[0].mxu0 %v547
          %v618 = vpop.f32.mrb[0].mxu0
          %v619 = vadd.f32 %v538, %v618
          %v620 = vpop.f32.mrb[0].mxu0
          %621 = vmatprep.mubr.f32.mxu0 0.0
          %622 = vmatmul.mubr.f32.gmra.mrb[0].mxu0 %v550
          %v623 = vpop.f32.mrb[0].mxu0
          %v624 = vadd.f32 %v543, %v623
          %v625 = vpop.f32.mrb[0].mxu0
          %626 = vdwg.mxu0
          %s627 = scalar_lea.vmem [#allocation4], 16
          %v628 = vld [vmem:[%s627] sm:$0xff]
          %v629 = vld [vmem:[%s627 + $0x8] sm:$0xff]
          %v631 = vsel %vm253, %v628, 0
          %v634 = vsel %vm253, %v629, 0
          %636 = vmatprep.subr.mxu0 0.0
          %637 = vmatpush1.msra.mxu0 %v298
          %638 = vmatprep.subr.mxu0 0.0
          %639 = vmatpush1.msra.mxu0 %v299
          %640 = vmatprep.subr.mxu0 0.0
          %641 = vmatpush1.msra.mxu0 0.0
          %642 = vmatprep.subr.mxu0 0.0
          %643 = vmatpush1.msra.mxu0 0.0
          %644 = vmatprep.subr.mxu0 0.0
          %645 = vmatpush1.msra.mxu0 0.0
          %646 = vmatprep.subr.mxu0 0.0
          %647 = vmatpush1.msra.mxu0 0.0
          %648 = vmatprep.subr.mxu0 0.0
          %649 = vmatpush1.msra.mxu0 0.0
          %650 = vmatprep.subr.mxu0 0.0
          %651 = vmatpush1.msra.mxu0 0.0
          %652 = vmatprep.subr.mxu0 0.0
          %653 = vmatpush1.msra.mxu0 0.0
          %654 = vmatprep.subr.mxu0 0.0
          %655 = vmatpush1.msra.mxu0 0.0
          %656 = vmatprep.subr.mxu0 0.0
          %657 = vmatpush1.msra.mxu0 0.0
          %658 = vmatprep.subr.mxu0 0.0
          %659 = vmatpush1.msra.mxu0 0.0
          %660 = vmatprep.subr.mxu0 0.0
          %661 = vmatpush1.msra.mxu0 0.0
          %662 = vmatprep.subr.mxu0 0.0
          %663 = vmatpush1.msra.mxu0 0.0
          %664 = vmatprep.subr.mxu0 0.0
          %665 = vmatpush1.msra.mxu0 0.0
          %666 = vmatprep.subr.mxu0 0.0
          %667 = vmatpush1.msra.mxu0 0.0
          %668 = vmatprep.subr.mxu0 0.0
          %669 = vmatpush1.msra.mxu0 0.0
          %670 = vmatprep.subr.mxu0 0.0
          %671 = vmatpush1.msra.mxu0 0.0
          %672 = vmatprep.subr.mxu0 0.0
          %673 = vmatpush1.msra.mxu0 0.0
          %674 = vmatprep.subr.mxu0 0.0
          %675 = vmatpush1.msra.mxu0 0.0
          %676 = vmatprep.subr.mxu0 0.0
          %677 = vmatpush1.msra.mxu0 0.0
          %678 = vmatprep.subr.mxu0 0.0
          %679 = vmatpush1.msra.mxu0 0.0
          %680 = vmatprep.subr.mxu0 0.0
          %681 = vmatpush1.msra.mxu0 0.0
          %682 = vmatprep.subr.mxu0 0.0
          %683 = vmatpush1.msra.mxu0 0.0
          %684 = vmatprep.subr.mxu0 0.0
          %685 = vmatpush1.msra.mxu0 0.0
          %686 = vmatprep.subr.mxu0 0.0
          %687 = vmatpush1.msra.mxu0 0.0
          %688 = vmatprep.subr.mxu0 0.0
          %689 = vmatpush1.msra.mxu0 0.0
          %690 = vmatprep.subr.mxu0 0.0
          %691 = vmatpush1.msra.mxu0 0.0
          %692 = vmatprep.subr.mxu0 0.0
          %693 = vmatpush1.msra.mxu0 0.0
          %694 = vmatprep.subr.mxu0 0.0
          %695 = vmatpush1.msra.mxu0 0.0
          %696 = vmatprep.subr.mxu0 0.0
          %697 = vmatpush1.msra.mxu0 0.0
          %698 = vmatprep.subr.mxu0 0.0
          %699 = vmatpush1.msra.mxu0 0.0
          %700 = vmatprep.mubr.f32.mxu0 0.0
          %701 = vmatmul.mubr.f32.gmra.mrb[0].mxu0 %v631
          %v702 = vpop.f32.mrb[0].mxu0
          %v703 = vadd.f32 0.0, %v702
          %v704 = vpop.f32.mrb[0].mxu0
          %705 = vmatprep.mubr.f32.mxu0 0.0
          %706 = vmatmul.mubr.f32.gmra.mrb[0].mxu0 %v634
          %v707 = vpop.f32.mrb[0].mxu0
          %v708 = vadd.f32 0.0, %v707
          %v709 = vpop.f32.mrb[0].mxu0
          %710 = vdwg.mxu0
          %711 = vmatprep.subr.mxu0 0.0
          %712 = vmatpush1.msra.mxu0 %v300
          %713 = vmatprep.subr.mxu0 0.0
          %714 = vmatpush1.msra.mxu0 %v301
          %715 = vmatprep.subr.mxu0 0.0
          %716 = vmatpush1.msra.mxu0 0.0
          %717 = vmatprep.subr.mxu0 0.0
          %718 = vmatpush1.msra.mxu0 0.0
          %719 = vmatprep.subr.mxu0 0.0
          %720 = vmatpush1.msra.mxu0 0.0
          %721 = vmatprep.subr.mxu0 0.0
          %722 = vmatpush1.msra.mxu0 0.0
          %723 = vmatprep.subr.mxu0 0.0
          %724 = vmatpush1.msra.mxu0 0.0
          %725 = vmatprep.subr.mxu0 0.0
          %726 = vmatpush1.msra.mxu0 0.0
          %727 = vmatprep.subr.mxu0 0.0
          %728 = vmatpush1.msra.mxu0 0.0
          %729 = vmatprep.subr.mxu0 0.0
          %730 = vmatpush1.msra.mxu0 0.0
          %731 = vmatprep.subr.mxu0 0.0
          %732 = vmatpush1.msra.mxu0 0.0
          %733 = vmatprep.subr.mxu0 0.0
          %734 = vmatpush1.msra.mxu0 0.0
          %735 = vmatprep.subr.mxu0 0.0
          %736 = vmatpush1.msra.mxu0 0.0
          %737 = vmatprep.subr.mxu0 0.0
          %738 = vmatpush1.msra.mxu0 0.0
          %739 = vmatprep.subr.mxu0 0.0
          %740 = vmatpush1.msra.mxu0 0.0
          %741 = vmatprep.subr.mxu0 0.0
          %742 = vmatpush1.msra.mxu0 0.0
          %743 = vmatprep.subr.mxu0 0.0
          %744 = vmatpush1.msra.mxu0 0.0
          %745 = vmatprep.subr.mxu0 0.0
          %746 = vmatpush1.msra.mxu0 0.0
          %747 = vmatprep.subr.mxu0 0.0
          %748 = vmatpush1.msra.mxu0 0.0
          %749 = vmatprep.subr.mxu0 0.0
          %750 = vmatpush1.msra.mxu0 0.0
          %751 = vmatprep.subr.mxu0 0.0
          %752 = vmatpush1.msra.mxu0 0.0
          %753 = vmatprep.subr.mxu0 0.0
          %754 = vmatpush1.msra.mxu0 0.0
          %755 = vmatprep.subr.mxu0 0.0
          %756 = vmatpush1.msra.mxu0 0.0
          %757 = vmatprep.subr.mxu0 0.0
          %758 = vmatpush1.msra.mxu0 0.0
          %759 = vmatprep.subr.mxu0 0.0
          %760 = vmatpush1.msra.mxu0 0.0
          %761 = vmatprep.subr.mxu0 0.0
          %762 = vmatpush1.msra.mxu0 0.0
          %763 = vmatprep.subr.mxu0 0.0
          %764 = vmatpush1.msra.mxu0 0.0
          %765 = vmatprep.subr.mxu0 0.0
          %766 = vmatpush1.msra.mxu0 0.0
          %767 = vmatprep.subr.mxu0 0.0
          %768 = vmatpush1.msra.mxu0 0.0
          %769 = vmatprep.subr.mxu0 0.0
          %770 = vmatpush1.msra.mxu0 0.0
          %771 = vmatprep.subr.mxu0 0.0
          %772 = vmatpush1.msra.mxu0 0.0
          %773 = vmatprep.subr.mxu0 0.0
          %774 = vmatpush1.msra.mxu0 0.0
          %775 = vmatprep.mubr.f32.mxu0 0.0
          %776 = vmatmul.mubr.f32.gmra.mrb[0].mxu0 %v631
          %v777 = vpop.f32.mrb[0].mxu0
          %v778 = vadd.f32 0.0, %v777
          %v779 = vpop.f32.mrb[0].mxu0
          %780 = vmatprep.mubr.f32.mxu0 0.0
          %781 = vmatmul.mubr.f32.gmra.mrb[0].mxu0 %v634
          %v782 = vpop.f32.mrb[0].mxu0
          %v783 = vadd.f32 0.0, %v782
          %v784 = vpop.f32.mrb[0].mxu0
          %785 = vdwg.mxu0
          %s786 = scalar_lea.vmem [#allocation7], 16
          %v787 = vld [vmem:[%s786] sm:$0xff]
          %v788 = vld [vmem:[%s786 + $0x8] sm:$0xff]
          %v790 = vsel %vm253, %v703, 0
          %v793 = vsel %vm253, %v708, 0
          %795 = vmatprep.subr.mxu0 0.0
          %796 = vmatpush1.msra.mxu0 %v787
          %797 = vmatprep.subr.mxu0 0.0
          %798 = vmatpush1.msra.mxu0 %v788
          %799 = vmatprep.subr.mxu0 0.0
          %800 = vmatpush1.msra.mxu0 0.0
          %801 = vmatprep.subr.mxu0 0.0
          %802 = vmatpush1.msra.mxu0 0.0
          %803 = vmatprep.subr.mxu0 0.0
          %804 = vmatpush1.msra.mxu0 0.0
          %805 = vmatprep.subr.mxu0 0.0
          %806 = vmatpush1.msra.mxu0 0.0
          %807 = vmatprep.subr.mxu0 0.0
          %808 = vmatpush1.msra.mxu0 0.0
          %809 = vmatprep.subr.mxu0 0.0
          %810 = vmatpush1.msra.mxu0 0.0
          %811 = vmatprep.subr.mxu0 0.0
          %812 = vmatpush1.msra.mxu0 0.0
          %813 = vmatprep.subr.mxu0 0.0
          %814 = vmatpush1.msra.mxu0 0.0
          %815 = vmatprep.subr.mxu0 0.0
          %816 = vmatpush1.msra.mxu0 0.0
          %817 = vmatprep.subr.mxu0 0.0
          %818 = vmatpush1.msra.mxu0 0.0
          %819 = vmatprep.subr.mxu0 0.0
          %820 = vmatpush1.msra.mxu0 0.0
          %821 = vmatprep.subr.mxu0 0.0
          %822 = vmatpush1.msra.mxu0 0.0
          %823 = vmatprep.subr.mxu0 0.0
          %824 = vmatpush1.msra.mxu0 0.0
          %825 = vmatprep.subr.mxu0 0.0
          %826 = vmatpush1.msra.mxu0 0.0
          %827 = vmatprep.subr.mxu0 0.0
          %828 = vmatpush1.msra.mxu0 0.0
          %829 = vmatprep.subr.mxu0 0.0
          %830 = vmatpush1.msra.mxu0 0.0
          %831 = vmatprep.subr.mxu0 0.0
          %832 = vmatpush1.msra.mxu0 0.0
          %833 = vmatprep.subr.mxu0 0.0
          %834 = vmatpush1.msra.mxu0 0.0
          %835 = vmatprep.subr.mxu0 0.0
          %836 = vmatpush1.msra.mxu0 0.0
          %837 = vmatprep.subr.mxu0 0.0
          %838 = vmatpush1.msra.mxu0 0.0
          %839 = vmatprep.subr.mxu0 0.0
          %840 = vmatpush1.msra.mxu0 0.0
          %841 = vmatprep.subr.mxu0 0.0
          %842 = vmatpush1.msra.mxu0 0.0
          %843 = vmatprep.subr.mxu0 0.0
          %844 = vmatpush1.msra.mxu0 0.0
          %845 = vmatprep.subr.mxu0 0.0
          %846 = vmatpush1.msra.mxu0 0.0
          %847 = vmatprep.subr.mxu0 0.0
          %848 = vmatpush1.msra.mxu0 0.0
          %849 = vmatprep.subr.mxu0 0.0
          %850 = vmatpush1.msra.mxu0 0.0
          %851 = vmatprep.subr.mxu0 0.0
          %852 = vmatpush1.msra.mxu0 0.0
          %853 = vmatprep.subr.mxu0 0.0
          %854 = vmatpush1.msra.mxu0 0.0
          %855 = vmatprep.subr.mxu0 0.0
          %856 = vmatpush1.msra.mxu0 0.0
          %857 = vmatprep.subr.mxu0 0.0
          %858 = vmatpush1.msra.mxu0 0.0
          %859 = vmatprep.mubr.f32.mxu0 0.0
          %860 = vmatmul.mubr.f32.gmra.mrb[0].mxu0 %v790
          %v861 = vpop.f32.mrb[0].mxu0
          %v862 = vadd.f32 0.0, %v861
          %v863 = vpop.f32.mrb[0].mxu0
          %864 = vmatprep.mubr.f32.mxu0 0.0
          %865 = vmatmul.mubr.f32.gmra.mrb[0].mxu0 %v793
          %v866 = vpop.f32.mrb[0].mxu0
          %v867 = vadd.f32 0.0, %v866
          %v868 = vpop.f32.mrb[0].mxu0
          %869 = vdwg.mxu0
          %v870 = vadd.f32 %v619, %v862
          %v871 = vadd.f32 %v624, %v867
          %s872 = scalar_lea.vmem [#allocation7], 128
          %v873 = vld [vmem:[%s872] sm:$0xff]
          %v874 = vld [vmem:[%s872 + $0x8] sm:$0xff]
          %v876 = vsel %vm253, %v778, 0
          %v879 = vsel %vm253, %v783, 0
          %881 = vmatprep.subr.mxu0 0.0
          %882 = vmatpush1.msra.mxu0 %v873
          %883 = vmatprep.subr.mxu0 0.0
          %884 = vmatpush1.msra.mxu0 %v874
          %885 = vmatprep.subr.mxu0 0.0
          %886 = vmatpush1.msra.mxu0 0.0
          %887 = vmatprep.subr.mxu0 0.0
          %888 = vmatpush1.msra.mxu0 0.0
          %889 = vmatprep.subr.mxu0 0.0
          %890 = vmatpush1.msra.mxu0 0.0
          %891 = vmatprep.subr.mxu0 0.0
          %892 = vmatpush1.msra.mxu0 0.0
          %893 = vmatprep.subr.mxu0 0.0
          %894 = vmatpush1.msra.mxu0 0.0
          %895 = vmatprep.subr.mxu0 0.0
          %896 = vmatpush1.msra.mxu0 0.0
          %897 = vmatprep.subr.mxu0 0.0
          %898 = vmatpush1.msra.mxu0 0.0
          %899 = vmatprep.subr.mxu0 0.0
          %900 = vmatpush1.msra.mxu0 0.0
          %901 = vmatprep.subr.mxu0 0.0
          %902 = vmatpush1.msra.mxu0 0.0
          %903 = vmatprep.subr.mxu0 0.0
          %904 = vmatpush1.msra.mxu0 0.0
          %905 = vmatprep.subr.mxu0 0.0
          %906 = vmatpush1.msra.mxu0 0.0
          %907 = vmatprep.subr.mxu0 0.0
          %908 = vmatpush1.msra.mxu0 0.0
          %909 = vmatprep.subr.mxu0 0.0
          %910 = vmatpush1.msra.mxu0 0.0
          %911 = vmatprep.subr.mxu0 0.0
          %912 = vmatpush1.msra.mxu0 0.0
          %913 = vmatprep.subr.mxu0 0.0
          %914 = vmatpush1.msra.mxu0 0.0
          %915 = vmatprep.subr.mxu0 0.0
          %916 = vmatpush1.msra.mxu0 0.0
          %917 = vmatprep.subr.mxu0 0.0
          %918 = vmatpush1.msra.mxu0 0.0
          %919 = vmatprep.subr.mxu0 0.0
          %920 = vmatpush1.msra.mxu0 0.0
          %921 = vmatprep.subr.mxu0 0.0
          %922 = vmatpush1.msra.mxu0 0.0
          %923 = vmatprep.subr.mxu0 0.0
          %924 = vmatpush1.msra.mxu0 0.0
          %925 = vmatprep.subr.mxu0 0.0
          %926 = vmatpush1.msra.mxu0 0.0
          %927 = vmatprep.subr.mxu0 0.0
          %928 = vmatpush1.msra.mxu0 0.0
          %929 = vmatprep.subr.mxu0 0.0
          %930 = vmatpush1.msra.mxu0 0.0
          %931 = vmatprep.subr.mxu0 0.0
          %932 = vmatpush1.msra.mxu0 0.0
          %933 = vmatprep.subr.mxu0 0.0
          %934 = vmatpush1.msra.mxu0 0.0
          %935 = vmatprep.subr.mxu0 0.0
          %936 = vmatpush1.msra.mxu0 0.0
          %937 = vmatprep.subr.mxu0 0.0
          %938 = vmatpush1.msra.mxu0 0.0
          %939 = vmatprep.subr.mxu0 0.0
          %940 = vmatpush1.msra.mxu0 0.0
          %941 = vmatprep.subr.mxu0 0.0
          %942 = vmatpush1.msra.mxu0 0.0
          %943 = vmatprep.subr.mxu0 0.0
          %944 = vmatpush1.msra.mxu0 0.0
          %945 = vmatprep.mubr.f32.mxu0 0.0
          %946 = vmatmul.mubr.f32.gmra.mrb[0].mxu0 %v876
          %v947 = vpop.f32.mrb[0].mxu0
          %v948 = vadd.f32 0.0, %v947
          %v949 = vpop.f32.mrb[0].mxu0
          %950 = vmatprep.mubr.f32.mxu0 0.0
          %951 = vmatmul.mubr.f32.gmra.mrb[0].mxu0 %v879
          %v952 = vpop.f32.mrb[0].mxu0
          %v953 = vadd.f32 0.0, %v952
          %v954 = vpop.f32.mrb[0].mxu0
          %955 = vdwg.mxu0
          %v956 = vadd.f32 %v870, %v948
          %v957 = vadd.f32 %v871, %v953
          %s958 = scalar_lea.vmem [#allocation4], 32
          %v959 = vld [vmem:[%s958] sm:$0xff]
          %v960 = vld [vmem:[%s958 + $0x8] sm:$0xff]
          %v962 = vsel %vm253, %v959, 0
          %v965 = vsel %vm253, %v960, 0
          %967 = vmatprep.subr.mxu0 0.0
          %968 = vmatpush1.msra.mxu0 %v298
          %969 = vmatprep.subr.mxu0 0.0
          %970 = vmatpush1.msra.mxu0 %v299
          %971 = vmatprep.subr.mxu0 0.0
          %972 = vmatpush1.msra.mxu0 0.0
          %973 = vmatprep.subr.mxu0 0.0
          %974 = vmatpush1.msra.mxu0 0.0
          %975 = vmatprep.subr.mxu0 0.0
          %976 = vmatpush1.msra.mxu0 0.0
          %977 = vmatprep.subr.mxu0 0.0
          %978 = vmatpush1.msra.mxu0 0.0
          %979 = vmatprep.subr.mxu0 0.0
          %980 = vmatpush1.msra.mxu0 0.0
          %981 = vmatprep.subr.mxu0 0.0
          %982 = vmatpush1.msra.mxu0 0.0
          %983 = vmatprep.subr.mxu0 0.0
          %984 = vmatpush1.msra.mxu0 0.0
          %985 = vmatprep.subr.mxu0 0.0
          %986 = vmatpush1.msra.mxu0 0.0
          %987 = vmatprep.subr.mxu0 0.0
          %988 = vmatpush1.msra.mxu0 0.0
          %989 = vmatprep.subr.mxu0 0.0
          %990 = vmatpush1.msra.mxu0 0.0
          %991 = vmatprep.subr.mxu0 0.0
          %992 = vmatpush1.msra.mxu0 0.0
          %993 = vmatprep.subr.mxu0 0.0
          %994 = vmatpush1.msra.mxu0 0.0
          %995 = vmatprep.subr.mxu0 0.0
          %996 = vmatpush1.msra.mxu0 0.0
          %997 = vmatprep.subr.mxu0 0.0
          %998 = vmatpush1.msra.mxu0 0.0
          %999 = vmatprep.subr.mxu0 0.0
          %1000 = vmatpush1.msra.mxu0 0.0
          %1001 = vmatprep.subr.mxu0 0.0
          %1002 = vmatpush1.msra.mxu0 0.0
          %1003 = vmatprep.subr.mxu0 0.0
          %1004 = vmatpush1.msra.mxu0 0.0
          %1005 = vmatprep.subr.mxu0 0.0
          %1006 = vmatpush1.msra.mxu0 0.0
          %1007 = vmatprep.subr.mxu0 0.0
          %1008 = vmatpush1.msra.mxu0 0.0
          %1009 = vmatprep.subr.mxu0 0.0
          %1010 = vmatpush1.msra.mxu0 0.0
          %1011 = vmatprep.subr.mxu0 0.0
          %1012 = vmatpush1.msra.mxu0 0.0
          %1013 = vmatprep.subr.mxu0 0.0
          %1014 = vmatpush1.msra.mxu0 0.0
          %1015 = vmatprep.subr.mxu0 0.0
          %1016 = vmatpush1.msra.mxu0 0.0
          %1017 = vmatprep.subr.mxu0 0.0
          %1018 = vmatpush1.msra.mxu0 0.0
          %1019 = vmatprep.subr.mxu0 0.0
          %1020 = vmatpush1.msra.mxu0 0.0
          %1021 = vmatprep.subr.mxu0 0.0
          %1022 = vmatpush1.msra.mxu0 0.0
          %1023 = vmatprep.subr.mxu0 0.0
          %1024 = vmatpush1.msra.mxu0 0.0
          %1025 = vmatprep.subr.mxu0 0.0
          %1026 = vmatpush1.msra.mxu0 0.0
          %1027 = vmatprep.subr.mxu0 0.0
          %1028 = vmatpush1.msra.mxu0 0.0
          %1029 = vmatprep.subr.mxu0 0.0
          %1030 = vmatpush1.msra.mxu0 0.0
          %1031 = vmatprep.mubr.f32.mxu0 0.0
          %1032 = vmatmul.mubr.f32.gmra.mrb[0].mxu0 %v962
          %v1033 = vpop.f32.mrb[0].mxu0
          %v1034 = vadd.f32 0.0, %v1033
          %v1035 = vpop.f32.mrb[0].mxu0
          %1036 = vmatprep.mubr.f32.mxu0 0.0
          %1037 = vmatmul.mubr.f32.gmra.mrb[0].mxu0 %v965
          %v1038 = vpop.f32.mrb[0].mxu0
          %v1039 = vadd.f32 0.0, %v1038
          %v1040 = vpop.f32.mrb[0].mxu0
          %1041 = vdwg.mxu0
          %1042 = vmatprep.subr.mxu0 0.0
          %1043 = vmatpush1.msra.mxu0 %v300
          %1044 = vmatprep.subr.mxu0 0.0
          %1045 = vmatpush1.msra.mxu0 %v301
          %1046 = vmatprep.subr.mxu0 0.0
          %1047 = vmatpush1.msra.mxu0 0.0
          %1048 = vmatprep.subr.mxu0 0.0
          %1049 = vmatpush1.msra.mxu0 0.0
          %1050 = vmatprep.subr.mxu0 0.0
          %1051 = vmatpush1.msra.mxu0 0.0
          %1052 = vmatprep.subr.mxu0 0.0
          %1053 = vmatpush1.msra.mxu0 0.0
          %1054 = vmatprep.subr.mxu0 0.0
          %1055 = vmatpush1.msra.mxu0 0.0
          %1056 = vmatprep.subr.mxu0 0.0
          %1057 = vmatpush1.msra.mxu0 0.0
          %1058 = vmatprep.subr.mxu0 0.0
          %1059 = vmatpush1.msra.mxu0 0.0
          %1060 = vmatprep.subr.mxu0 0.0
          %1061 = vmatpush1.msra.mxu0 0.0
          %1062 = vmatprep.subr.mxu0 0.0
          %1063 = vmatpush1.msra.mxu0 0.0
          %1064 = vmatprep.subr.mxu0 0.0
          %1065 = vmatpush1.msra.mxu0 0.0
          %1066 = vmatprep.subr.mxu0 0.0
          %1067 = vmatpush1.msra.mxu0 0.0
          %1068 = vmatprep.subr.mxu0 0.0
          %1069 = vmatpush1.msra.mxu0 0.0
          %1070 = vmatprep.subr.mxu0 0.0
          %1071 = vmatpush1.msra.mxu0 0.0
          %1072 = vmatprep.subr.mxu0 0.0
          %1073 = vmatpush1.msra.mxu0 0.0
          %1074 = vmatprep.subr.mxu0 0.0
          %1075 = vmatpush1.msra.mxu0 0.0
          %1076 = vmatprep.subr.mxu0 0.0
          %1077 = vmatpush1.msra.mxu0 0.0
          %1078 = vmatprep.subr.mxu0 0.0
          %1079 = vmatpush1.msra.mxu0 0.0
          %1080 = vmatprep.subr.mxu0 0.0
          %1081 = vmatpush1.msra.mxu0 0.0
          %1082 = vmatprep.subr.mxu0 0.0
          %1083 = vmatpush1.msra.mxu0 0.0
          %1084 = vmatprep.subr.mxu0 0.0
          %1085 = vmatpush1.msra.mxu0 0.0
          %1086 = vmatprep.subr.mxu0 0.0
          %1087 = vmatpush1.msra.mxu0 0.0
          %1088 = vmatprep.subr.mxu0 0.0
          %1089 = vmatpush1.msra.mxu0 0.0
          %1090 = vmatprep.subr.mxu0 0.0
          %1091 = vmatpush1.msra.mxu0 0.0
          %1092 = vmatprep.subr.mxu0 0.0
          %1093 = vmatpush1.msra.mxu0 0.0
          %1094 = vmatprep.subr.mxu0 0.0
          %1095 = vmatpush1.msra.mxu0 0.0
          %1096 = vmatprep.subr.mxu0 0.0
          %1097 = vmatpush1.msra.mxu0 0.0
          %1098 = vmatprep.subr.mxu0 0.0
          %1099 = vmatpush1.msra.mxu0 0.0
          %1100 = vmatprep.subr.mxu0 0.0
          %1101 = vmatpush1.msra.mxu0 0.0
          %1102 = vmatprep.subr.mxu0 0.0
          %1103 = vmatpush1.msra.mxu0 0.0
          %1104 = vmatprep.subr.mxu0 0.0
          %1105 = vmatpush1.msra.mxu0 0.0
          %1106 = vmatprep.mubr.f32.mxu0 0.0
          %1107 = vmatmul.mubr.f32.gmra.mrb[0].mxu0 %v962
          %v1108 = vpop.f32.mrb[0].mxu0
          %v1109 = vadd.f32 0.0, %v1108
          %v1110 = vpop.f32.mrb[0].mxu0
          %1111 = vmatprep.mubr.f32.mxu0 0.0
          %1112 = vmatmul.mubr.f32.gmra.mrb[0].mxu0 %v965
          %v1113 = vpop.f32.mrb[0].mxu0
          %v1114 = vadd.f32 0.0, %v1113
          %v1115 = vpop.f32.mrb[0].mxu0
          %1116 = vdwg.mxu0
          %s1117 = scalar_lea.vmem [#allocation7], 32
          %v1118 = vld [vmem:[%s1117] sm:$0xff]
          %v1119 = vld [vmem:[%s1117 + $0x8] sm:$0xff]
          %v1121 = vsel %vm253, %v1034, 0
          %v1124 = vsel %vm253, %v1039, 0
          %1126 = vmatprep.subr.mxu0 0.0
          %1127 = vmatpush1.msra.mxu0 %v1118
          %1128 = vmatprep.subr.mxu0 0.0
          %1129 = vmatpush1.msra.mxu0 %v1119
          %1130 = vmatprep.subr.mxu0 0.0
          %1131 = vmatpush1.msra.mxu0 0.0
          %1132 = vmatprep.subr.mxu0 0.0
          %1133 = vmatpush1.msra.mxu0 0.0
          %1134 = vmatprep.subr.mxu0 0.0
          %1135 = vmatpush1.msra.mxu0 0.0
          %1136 = vmatprep.subr.mxu0 0.0
          %1137 = vmatpush1.msra.mxu0 0.0
          %1138 = vmatprep.subr.mxu0 0.0
          %1139 = vmatpush1.msra.mxu0 0.0
          %1140 = vmatprep.subr.mxu0 0.0
          %1141 = vmatpush1.msra.mxu0 0.0
          %1142 = vmatprep.subr.mxu0 0.0
          %1143 = vmatpush1.msra.mxu0 0.0
          %1144 = vmatprep.subr.mxu0 0.0
          %1145 = vmatpush1.msra.mxu0 0.0
          %1146 = vmatprep.subr.mxu0 0.0
          %1147 = vmatpush1.msra.mxu0 0.0
          %1148 = vmatprep.subr.mxu0 0.0
          %1149 = vmatpush1.msra.mxu0 0.0
          %1150 = vmatprep.subr.mxu0 0.0
          %1151 = vmatpush1.msra.mxu0 0.0
          %1152 = vmatprep.subr.mxu0 0.0
          %1153 = vmatpush1.msra.mxu0 0.0
          %1154 = vmatprep.subr.mxu0 0.0
          %1155 = vmatpush1.msra.mxu0 0.0
          %1156 = vmatprep.subr.mxu0 0.0
          %1157 = vmatpush1.msra.mxu0 0.0
          %1158 = vmatprep.subr.mxu0 0.0
          %1159 = vmatpush1.msra.mxu0 0.0
          %1160 = vmatprep.subr.mxu0 0.0
          %1161 = vmatpush1.msra.mxu0 0.0
          %1162 = vmatprep.subr.mxu0 0.0
          %1163 = vmatpush1.msra.mxu0 0.0
          %1164 = vmatprep.subr.mxu0 0.0
          %1165 = vmatpush1.msra.mxu0 0.0
          %1166 = vmatprep.subr.mxu0 0.0
          %1167 = vmatpush1.msra.mxu0 0.0
          %1168 = vmatprep.subr.mxu0 0.0
          %1169 = vmatpush1.msra.mxu0 0.0
          %1170 = vmatprep.subr.mxu0 0.0
          %1171 = vmatpush1.msra.mxu0 0.0
          %1172 = vmatprep.subr.mxu0 0.0
          %1173 = vmatpush1.msra.mxu0 0.0
          %1174 = vmatprep.subr.mxu0 0.0
          %1175 = vmatpush1.msra.mxu0 0.0
          %1176 = vmatprep.subr.mxu0 0.0
          %1177 = vmatpush1.msra.mxu0 0.0
          %1178 = vmatprep.subr.mxu0 0.0
          %1179 = vmatpush1.msra.mxu0 0.0
          %1180 = vmatprep.subr.mxu0 0.0
          %1181 = vmatpush1.msra.mxu0 0.0
          %1182 = vmatprep.subr.mxu0 0.0
          %1183 = vmatpush1.msra.mxu0 0.0
          %1184 = vmatprep.subr.mxu0 0.0
          %1185 = vmatpush1.msra.mxu0 0.0
          %1186 = vmatprep.subr.mxu0 0.0
          %1187 = vmatpush1.msra.mxu0 0.0
          %1188 = vmatprep.subr.mxu0 0.0
          %1189 = vmatpush1.msra.mxu0 0.0
          %1190 = vmatprep.mubr.f32.mxu0 0.0
          %1191 = vmatmul.mubr.f32.gmra.mrb[0].mxu0 %v1121
          %v1192 = vpop.f32.mrb[0].mxu0
          %v1193 = vadd.f32 0.0, %v1192
          %v1194 = vpop.f32.mrb[0].mxu0
          %1195 = vmatprep.mubr.f32.mxu0 0.0
          %1196 = vmatmul.mubr.f32.gmra.mrb[0].mxu0 %v1124
          %v1197 = vpop.f32.mrb[0].mxu0
          %v1198 = vadd.f32 0.0, %v1197
          %v1199 = vpop.f32.mrb[0].mxu0
          %1200 = vdwg.mxu0
          %v1201 = vadd.f32 %v956, %v1193
          %v1202 = vadd.f32 %v957, %v1198
          %s1203 = scalar_lea.vmem [#allocation7], 144
          %v1204 = vld [vmem:[%s1203] sm:$0xff]
          %v1205 = vld [vmem:[%s1203 + $0x8] sm:$0xff]
          %v1207 = vsel %vm253, %v1109, 0
          %v1210 = vsel %vm253, %v1114, 0
          %1212 = vmatprep.subr.mxu0 0.0
          %1213 = vmatpush1.msra.mxu0 %v1204
          %1214 = vmatprep.subr.mxu0 0.0
          %1215 = vmatpush1.msra.mxu0 %v1205
          %1216 = vmatprep.subr.mxu0 0.0
          %1217 = vmatpush1.msra.mxu0 0.0
          %1218 = vmatprep.subr.mxu0 0.0
          %1219 = vmatpush1.msra.mxu0 0.0
          %1220 = vmatprep.subr.mxu0 0.0
          %1221 = vmatpush1.msra.mxu0 0.0
          %1222 = vmatprep.subr.mxu0 0.0
          %1223 = vmatpush1.msra.mxu0 0.0
          %1224 = vmatprep.subr.mxu0 0.0
          %1225 = vmatpush1.msra.mxu0 0.0
          %1226 = vmatprep.subr.mxu0 0.0
          %1227 = vmatpush1.msra.mxu0 0.0
          %1228 = vmatprep.subr.mxu0 0.0
          %1229 = vmatpush1.msra.mxu0 0.0
          %1230 = vmatprep.subr.mxu0 0.0
          %1231 = vmatpush1.msra.mxu0 0.0
          %1232 = vmatprep.subr.mxu0 0.0
          %1233 = vmatpush1.msra.mxu0 0.0
          %1234 = vmatprep.subr.mxu0 0.0
          %1235 = vmatpush1.msra.mxu0 0.0
          %1236 = vmatprep.subr.mxu0 0.0
          %1237 = vmatpush1.msra.mxu0 0.0
          %1238 = vmatprep.subr.mxu0 0.0
          %1239 = vmatpush1.msra.mxu0 0.0
          %1240 = vmatprep.subr.mxu0 0.0
          %1241 = vmatpush1.msra.mxu0 0.0
          %1242 = vmatprep.subr.mxu0 0.0
          %1243 = vmatpush1.msra.mxu0 0.0
          %1244 = vmatprep.subr.mxu0 0.0
          %1245 = vmatpush1.msra.mxu0 0.0
          %1246 = vmatprep.subr.mxu0 0.0
          %1247 = vmatpush1.msra.mxu0 0.0
          %1248 = vmatprep.subr.mxu0 0.0
          %1249 = vmatpush1.msra.mxu0 0.0
          %1250 = vmatprep.subr.mxu0 0.0
          %1251 = vmatpush1.msra.mxu0 0.0
          %1252 = vmatprep.subr.mxu0 0.0
          %1253 = vmatpush1.msra.mxu0 0.0
          %1254 = vmatprep.subr.mxu0 0.0
          %1255 = vmatpush1.msra.mxu0 0.0
          %1256 = vmatprep.subr.mxu0 0.0
          %1257 = vmatpush1.msra.mxu0 0.0
          %1258 = vmatprep.subr.mxu0 0.0
          %1259 = vmatpush1.msra.mxu0 0.0
          %1260 = vmatprep.subr.mxu0 0.0
          %1261 = vmatpush1.msra.mxu0 0.0
          %1262 = vmatprep.subr.mxu0 0.0
          %1263 = vmatpush1.msra.mxu0 0.0
          %1264 = vmatprep.subr.mxu0 0.0
          %1265 = vmatpush1.msra.mxu0 0.0
          %1266 = vmatprep.subr.mxu0 0.0
          %1267 = vmatpush1.msra.mxu0 0.0
          %1268 = vmatprep.subr.mxu0 0.0
          %1269 = vmatpush1.msra.mxu0 0.0
          %1270 = vmatprep.subr.mxu0 0.0
          %1271 = vmatpush1.msra.mxu0 0.0
          %1272 = vmatprep.subr.mxu0 0.0
          %1273 = vmatpush1.msra.mxu0 0.0
          %1274 = vmatprep.subr.mxu0 0.0
          %1275 = vmatpush1.msra.mxu0 0.0
          %1276 = vmatprep.mubr.f32.mxu0 0.0
          %1277 = vmatmul.mubr.f32.gmra.mrb[0].mxu0 %v1207
          %v1278 = vpop.f32.mrb[0].mxu0
          %v1279 = vadd.f32 0.0, %v1278
          %v1280 = vpop.f32.mrb[0].mxu0
          %1281 = vmatprep.mubr.f32.mxu0 0.0
          %1282 = vmatmul.mubr.f32.gmra.mrb[0].mxu0 %v1210
          %v1283 = vpop.f32.mrb[0].mxu0
          %v1284 = vadd.f32 0.0, %v1283
          %v1285 = vpop.f32.mrb[0].mxu0
          %1286 = vdwg.mxu0
          %v1287 = vadd.f32 %v1201, %v1279
          %v1288 = vadd.f32 %v1202, %v1284
          %s1289 = scalar_lea.vmem [#allocation4], 48
          %v1290 = vld [vmem:[%s1289] sm:$0xff]
          %v1291 = vld [vmem:[%s1289 + $0x8] sm:$0xff]
          %v1293 = vsel %vm253, %v1290, 0
          %v1296 = vsel %vm253, %v1291, 0
          %1298 = vmatprep.subr.mxu0 0.0
          %1299 = vmatpush1.msra.mxu0 %v298
          %1300 = vmatprep.subr.mxu0 0.0
          %1301 = vmatpush1.msra.mxu0 %v299
          %1302 = vmatprep.subr.mxu0 0.0
          %1303 = vmatpush1.msra.mxu0 0.0
          %1304 = vmatprep.subr.mxu0 0.0
          %1305 = vmatpush1.msra.mxu0 0.0
          %1306 = vmatprep.subr.mxu0 0.0
          %1307 = vmatpush1.msra.mxu0 0.0
          %1308 = vmatprep.subr.mxu0 0.0
          %1309 = vmatpush1.msra.mxu0 0.0
          %1310 = vmatprep.subr.mxu0 0.0
          %1311 = vmatpush1.msra.mxu0 0.0
          %1312 = vmatprep.subr.mxu0 0.0
          %1313 = vmatpush1.msra.mxu0 0.0
          %1314 = vmatprep.subr.mxu0 0.0
          %1315 = vmatpush1.msra.mxu0 0.0
          %1316 = vmatprep.subr.mxu0 0.0
          %1317 = vmatpush1.msra.mxu0 0.0
          %1318 = vmatprep.subr.mxu0 0.0
          %1319 = vmatpush1.msra.mxu0 0.0
          %1320 = vmatprep.subr.mxu0 0.0
          %1321 = vmatpush1.msra.mxu0 0.0
          %1322 = vmatprep.subr.mxu0 0.0
          %1323 = vmatpush1.msra.mxu0 0.0
          %1324 = vmatprep.subr.mxu0 0.0
          %1325 = vmatpush1.msra.mxu0 0.0
          %1326 = vmatprep.subr.mxu0 0.0
          %1327 = vmatpush1.msra.mxu0 0.0
          %1328 = vmatprep.subr.mxu0 0.0
          %1329 = vmatpush1.msra.mxu0 0.0
          %1330 = vmatprep.subr.mxu0 0.0
          %1331 = vmatpush1.msra.mxu0 0.0
          %1332 = vmatprep.subr.mxu0 0.0
          %1333 = vmatpush1.msra.mxu0 0.0
          %1334 = vmatprep.subr.mxu0 0.0
          %1335 = vmatpush1.msra.mxu0 0.0
          %1336 = vmatprep.subr.mxu0 0.0
          %1337 = vmatpush1.msra.mxu0 0.0
          %1338 = vmatprep.subr.mxu0 0.0
          %1339 = vmatpush1.msra.mxu0 0.0
          %1340 = vmatprep.subr.mxu0 0.0
          %1341 = vmatpush1.msra.mxu0 0.0
          %1342 = vmatprep.subr.mxu0 0.0
          %1343 = vmatpush1.msra.mxu0 0.0
          %1344 = vmatprep.subr.mxu0 0.0
          %1345 = vmatpush1.msra.mxu0 0.0
          %1346 = vmatprep.subr.mxu0 0.0
          %1347 = vmatpush1.msra.mxu0 0.0
          %1348 = vmatprep.subr.mxu0 0.0
          %1349 = vmatpush1.msra.mxu0 0.0
          %1350 = vmatprep.subr.mxu0 0.0
          %1351 = vmatpush1.msra.mxu0 0.0
          %1352 = vmatprep.subr.mxu0 0.0
          %1353 = vmatpush1.msra.mxu0 0.0
          %1354 = vmatprep.subr.mxu0 0.0
          %1355 = vmatpush1.msra.mxu0 0.0
          %1356 = vmatprep.subr.mxu0 0.0
          %1357 = vmatpush1.msra.mxu0 0.0
          %1358 = vmatprep.subr.mxu0 0.0
          %1359 = vmatpush1.msra.mxu0 0.0
          %1360 = vmatprep.subr.mxu0 0.0
          %1361 = vmatpush1.msra.mxu0 0.0
          %1362 = vmatprep.mubr.f32.mxu0 0.0
          %1363 = vmatmul.mubr.f32.gmra.mrb[0].mxu0 %v1293
          %v1364 = vpop.f32.mrb[0].mxu0
          %v1365 = vadd.f32 0.0, %v1364
          %v1366 = vpop.f32.mrb[0].mxu0
          %1367 = vmatprep.mubr.f32.mxu0 0.0
          %1368 = vmatmul.mubr.f32.gmra.mrb[0].mxu0 %v1296
          %v1369 = vpop.f32.mrb[0].mxu0
          %v1370 = vadd.f32 0.0, %v1369
          %v1371 = vpop.f32.mrb[0].mxu0
          %1372 = vdwg.mxu0
          %1373 = vmatprep.subr.mxu0 0.0
          %1374 = vmatpush1.msra.mxu0 %v300
          %1375 = vmatprep.subr.mxu0 0.0
          %1376 = vmatpush1.msra.mxu0 %v301
          %1377 = vmatprep.subr.mxu0 0.0
          %1378 = vmatpush1.msra.mxu0 0.0
          %1379 = vmatprep.subr.mxu0 0.0
          %1380 = vmatpush1.msra.mxu0 0.0
          %1381 = vmatprep.subr.mxu0 0.0
          %1382 = vmatpush1.msra.mxu0 0.0
          %1383 = vmatprep.subr.mxu0 0.0
          %1384 = vmatpush1.msra.mxu0 0.0
          %1385 = vmatprep.subr.mxu0 0.0
          %1386 = vmatpush1.msra.mxu0 0.0
          %1387 = vmatprep.subr.mxu0 0.0
          %1388 = vmatpush1.msra.mxu0 0.0
          %1389 = vmatprep.subr.mxu0 0.0
          %1390 = vmatpush1.msra.mxu0 0.0
          %1391 = vmatprep.subr.mxu0 0.0
          %1392 = vmatpush1.msra.mxu0 0.0
          %1393 = vmatprep.subr.mxu0 0.0
          %1394 = vmatpush1.msra.mxu0 0.0
          %1395 = vmatprep.subr.mxu0 0.0
          %1396 = vmatpush1.msra.mxu0 0.0
          %1397 = vmatprep.subr.mxu0 0.0
          %1398 = vmatpush1.msra.mxu0 0.0
          %1399 = vmatprep.subr.mxu0 0.0
          %1400 = vmatpush1.msra.mxu0 0.0
          %1401 = vmatprep.subr.mxu0 0.0
          %1402 = vmatpush1.msra.mxu0 0.0
          %1403 = vmatprep.subr.mxu0 0.0
          %1404 = vmatpush1.msra.mxu0 0.0
          %1405 = vmatprep.subr.mxu0 0.0
          %1406 = vmatpush1.msra.mxu0 0.0
          %1407 = vmatprep.subr.mxu0 0.0
          %1408 = vmatpush1.msra.mxu0 0.0
          %1409 = vmatprep.subr.mxu0 0.0
          %1410 = vmatpush1.msra.mxu0 0.0
          %1411 = vmatprep.subr.mxu0 0.0
          %1412 = vmatpush1.msra.mxu0 0.0
          %1413 = vmatprep.subr.mxu0 0.0
          %1414 = vmatpush1.msra.mxu0 0.0
          %1415 = vmatprep.subr.mxu0 0.0
          %1416 = vmatpush1.msra.mxu0 0.0
          %1417 = vmatprep.subr.mxu0 0.0
          %1418 = vmatpush1.msra.mxu0 0.0
          %1419 = vmatprep.subr.mxu0 0.0
          %1420 = vmatpush1.msra.mxu0 0.0
          %1421 = vmatprep.subr.mxu0 0.0
          %1422 = vmatpush1.msra.mxu0 0.0
          %1423 = vmatprep.subr.mxu0 0.0
          %1424 = vmatpush1.msra.mxu0 0.0
          %1425 = vmatprep.subr.mxu0 0.0
          %1426 = vmatpush1.msra.mxu0 0.0
          %1427 = vmatprep.subr.mxu0 0.0
          %1428 = vmatpush1.msra.mxu0 0.0
          %1429 = vmatprep.subr.mxu0 0.0
          %1430 = vmatpush1.msra.mxu0 0.0
          %1431 = vmatprep.subr.mxu0 0.0
          %1432 = vmatpush1.msra.mxu0 0.0
          %1433 = vmatprep.subr.mxu0 0.0
          %1434 = vmatpush1.msra.mxu0 0.0
          %1435 = vmatprep.subr.mxu0 0.0
          %1436 = vmatpush1.msra.mxu0 0.0
          %1437 = vmatprep.mubr.f32.mxu0 0.0
          %1438 = vmatmul.mubr.f32.gmra.mrb[0].mxu0 %v1293
          %v1439 = vpop.f32.mrb[0].mxu0
          %v1440 = vadd.f32 0.0, %v1439
          %v1441 = vpop.f32.mrb[0].mxu0
          %1442 = vmatprep.mubr.f32.mxu0 0.0
          %1443 = vmatmul.mubr.f32.gmra.mrb[0].mxu0 %v1296
          %v1444 = vpop.f32.mrb[0].mxu0
          %v1445 = vadd.f32 0.0, %v1444
          %v1446 = vpop.f32.mrb[0].mxu0
          %1447 = vdwg.mxu0
          %s1448 = scalar_lea.vmem [#allocation7], 48
          %v1449 = vld [vmem:[%s1448] sm:$0xff]
          %v1450 = vld [vmem:[%s1448 + $0x8] sm:$0xff]
          %v1452 = vsel %vm253, %v1365, 0
          %v1455 = vsel %vm253, %v1370, 0
          %1457 = vmatprep.subr.mxu0 0.0
          %1458 = vmatpush1.msra.mxu0 %v1449
          %1459 = vmatprep.subr.mxu0 0.0
          %1460 = vmatpush1.msra.mxu0 %v1450
          %1461 = vmatprep.subr.mxu0 0.0
          %1462 = vmatpush1.msra.mxu0 0.0
          %1463 = vmatprep.subr.mxu0 0.0
          %1464 = vmatpush1.msra.mxu0 0.0
          %1465 = vmatprep.subr.mxu0 0.0
          %1466 = vmatpush1.msra.mxu0 0.0
          %1467 = vmatprep.subr.mxu0 0.0
          %1468 = vmatpush1.msra.mxu0 0.0
          %1469 = vmatprep.subr.mxu0 0.0
          %1470 = vmatpush1.msra.mxu0 0.0
          %1471 = vmatprep.subr.mxu0 0.0
          %1472 = vmatpush1.msra.mxu0 0.0
          %1473 = vmatprep.subr.mxu0 0.0
          %1474 = vmatpush1.msra.mxu0 0.0
          %1475 = vmatprep.subr.mxu0 0.0
          %1476 = vmatpush1.msra.mxu0 0.0
          %1477 = vmatprep.subr.mxu0 0.0
          %1478 = vmatpush1.msra.mxu0 0.0
          %1479 = vmatprep.subr.mxu0 0.0
          %1480 = vmatpush1.msra.mxu0 0.0
          %1481 = vmatprep.subr.mxu0 0.0
          %1482 = vmatpush1.msra.mxu0 0.0
          %1483 = vmatprep.subr.mxu0 0.0
          %1484 = vmatpush1.msra.mxu0 0.0
          %1485 = vmatprep.subr.mxu0 0.0
          %1486 = vmatpush1.msra.mxu0 0.0
          %1487 = vmatprep.subr.mxu0 0.0
          %1488 = vmatpush1.msra.mxu0 0.0
          %1489 = vmatprep.subr.mxu0 0.0
          %1490 = vmatpush1.msra.mxu0 0.0
          %1491 = vmatprep.subr.mxu0 0.0
          %1492 = vmatpush1.msra.mxu0 0.0
          %1493 = vmatprep.subr.mxu0 0.0
          %1494 = vmatpush1.msra.mxu0 0.0
          %1495 = vmatprep.subr.mxu0 0.0
          %1496 = vmatpush1.msra.mxu0 0.0
          %1497 = vmatprep.subr.mxu0 0.0
          %1498 = vmatpush1.msra.mxu0 0.0
          %1499 = vmatprep.subr.mxu0 0.0
          %1500 = vmatpush1.msra.mxu0 0.0
          %1501 = vmatprep.subr.mxu0 0.0
          %1502 = vmatpush1.msra.mxu0 0.0
          %1503 = vmatprep.subr.mxu0 0.0
          %1504 = vmatpush1.msra.mxu0 0.0
          %1505 = vmatprep.subr.mxu0 0.0
          %1506 = vmatpush1.msra.mxu0 0.0
          %1507 = vmatprep.subr.mxu0 0.0
          %1508 = vmatpush1.msra.mxu0 0.0
          %1509 = vmatprep.subr.mxu0 0.0
          %1510 = vmatpush1.msra.mxu0 0.0
          %1511 = vmatprep.subr.mxu0 0.0
          %1512 = vmatpush1.msra.mxu0 0.0
          %1513 = vmatprep.subr.mxu0 0.0
          %1514 = vmatpush1.msra.mxu0 0.0
          %1515 = vmatprep.subr.mxu0 0.0
          %1516 = vmatpush1.msra.mxu0 0.0
          %1517 = vmatprep.subr.mxu0 0.0
          %1518 = vmatpush1.msra.mxu0 0.0
          %1519 = vmatprep.subr.mxu0 0.0
          %1520 = vmatpush1.msra.mxu0 0.0
          %1521 = vmatprep.mubr.f32.mxu0 0.0
          %1522 = vmatmul.mubr.f32.gmra.mrb[0].mxu0 %v1452
          %v1523 = vpop.f32.mrb[0].mxu0
          %v1524 = vadd.f32 0.0, %v1523
          %v1525 = vpop.f32.mrb[0].mxu0
          %1526 = vmatprep.mubr.f32.mxu0 0.0
          %1527 = vmatmul.mubr.f32.gmra.mrb[0].mxu0 %v1455
          %v1528 = vpop.f32.mrb[0].mxu0
          %v1529 = vadd.f32 0.0, %v1528
          %v1530 = vpop.f32.mrb[0].mxu0
          %1531 = vdwg.mxu0
          %v1532 = vadd.f32 %v1287, %v1524
          %v1533 = vadd.f32 %v1288, %v1529
          %s1534 = scalar_lea.vmem [#allocation7], 160
          %v1535 = vld [vmem:[%s1534] sm:$0xff]
          %v1536 = vld [vmem:[%s1534 + $0x8] sm:$0xff]
          %v1538 = vsel %vm253, %v1440, 0
          %v1541 = vsel %vm253, %v1445, 0
          %1543 = vmatprep.subr.mxu0 0.0
          %1544 = vmatpush1.msra.mxu0 %v1535
          %1545 = vmatprep.subr.mxu0 0.0
          %1546 = vmatpush1.msra.mxu0 %v1536
          %1547 = vmatprep.subr.mxu0 0.0
          %1548 = vmatpush1.msra.mxu0 0.0
          %1549 = vmatprep.subr.mxu0 0.0
          %1550 = vmatpush1.msra.mxu0 0.0
          %1551 = vmatprep.subr.mxu0 0.0
          %1552 = vmatpush1.msra.mxu0 0.0
          %1553 = vmatprep.subr.mxu0 0.0
          %1554 = vmatpush1.msra.mxu0 0.0
          %1555 = vmatprep.subr.mxu0 0.0
          %1556 = vmatpush1.msra.mxu0 0.0
          %1557 = vmatprep.subr.mxu0 0.0
          %1558 = vmatpush1.msra.mxu0 0.0
          %1559 = vmatprep.subr.mxu0 0.0
          %1560 = vmatpush1.msra.mxu0 0.0
          %1561 = vmatprep.subr.mxu0 0.0
          %1562 = vmatpush1.msra.mxu0 0.0
          %1563 = vmatprep.subr.mxu0 0.0
          %1564 = vmatpush1.msra.mxu0 0.0
          %1565 = vmatprep.subr.mxu0 0.0
          %1566 = vmatpush1.msra.mxu0 0.0
          %1567 = vmatprep.subr.mxu0 0.0
          %1568 = vmatpush1.msra.mxu0 0.0
          %1569 = vmatprep.subr.mxu0 0.0
          %1570 = vmatpush1.msra.mxu0 0.0
          %1571 = vmatprep.subr.mxu0 0.0
          %1572 = vmatpush1.msra.mxu0 0.0
          %1573 = vmatprep.subr.mxu0 0.0
          %1574 = vmatpush1.msra.mxu0 0.0
          %1575 = vmatprep.subr.mxu0 0.0
          %1576 = vmatpush1.msra.mxu0 0.0
          %1577 = vmatprep.subr.mxu0 0.0
          %1578 = vmatpush1.msra.mxu0 0.0
          %1579 = vmatprep.subr.mxu0 0.0
          %1580 = vmatpush1.msra.mxu0 0.0
          %1581 = vmatprep.subr.mxu0 0.0
          %1582 = vmatpush1.msra.mxu0 0.0
          %1583 = vmatprep.subr.mxu0 0.0
          %1584 = vmatpush1.msra.mxu0 0.0
          %1585 = vmatprep.subr.mxu0 0.0
          %1586 = vmatpush1.msra.mxu0 0.0
          %1587 = vmatprep.subr.mxu0 0.0
          %1588 = vmatpush1.msra.mxu0 0.0
          %1589 = vmatprep.subr.mxu0 0.0
          %1590 = vmatpush1.msra.mxu0 0.0
          %1591 = vmatprep.subr.mxu0 0.0
          %1592 = vmatpush1.msra.mxu0 0.0
          %1593 = vmatprep.subr.mxu0 0.0
          %1594 = vmatpush1.msra.mxu0 0.0
          %1595 = vmatprep.subr.mxu0 0.0
          %1596 = vmatpush1.msra.mxu0 0.0
          %1597 = vmatprep.subr.mxu0 0.0
          %1598 = vmatpush1.msra.mxu0 0.0
          %1599 = vmatprep.subr.mxu0 0.0
          %1600 = vmatpush1.msra.mxu0 0.0
          %1601 = vmatprep.subr.mxu0 0.0
          %1602 = vmatpush1.msra.mxu0 0.0
          %1603 = vmatprep.subr.mxu0 0.0
          %1604 = vmatpush1.msra.mxu0 0.0
          %1605 = vmatprep.subr.mxu0 0.0
          %1606 = vmatpush1.msra.mxu0 0.0
          %1607 = vmatprep.mubr.f32.mxu0 0.0
          %1608 = vmatmul.mubr.f32.gmra.mrb[0].mxu0 %v1538
          %v1609 = vpop.f32.mrb[0].mxu0
          %v1610 = vadd.f32 0.0, %v1609
          %v1611 = vpop.f32.mrb[0].mxu0
          %1612 = vmatprep.mubr.f32.mxu0 0.0
          %1613 = vmatmul.mubr.f32.gmra.mrb[0].mxu0 %v1541
          %v1614 = vpop.f32.mrb[0].mxu0
          %v1615 = vadd.f32 0.0, %v1614
          %v1616 = vpop.f32.mrb[0].mxu0
          %1617 = vdwg.mxu0
          %v1618 = vadd.f32 %v1532, %v1610
          %v1619 = vadd.f32 %v1533, %v1615
          %s1620 = scalar_lea.vmem [#allocation4], 64
          %v1621 = vld [vmem:[%s1620] sm:$0xff]
          %v1622 = vld [vmem:[%s1620 + $0x8] sm:$0xff]
          %v1624 = vsel %vm253, %v1621, 0
          %v1627 = vsel %vm253, %v1622, 0
          %1629 = vmatprep.subr.mxu0 0.0
          %1630 = vmatpush1.msra.mxu0 %v298
          %1631 = vmatprep.subr.mxu0 0.0
          %1632 = vmatpush1.msra.mxu0 %v299
          %1633 = vmatprep.subr.mxu0 0.0
          %1634 = vmatpush1.msra.mxu0 0.0
          %1635 = vmatprep.subr.mxu0 0.0
          %1636 = vmatpush1.msra.mxu0 0.0
          %1637 = vmatprep.subr.mxu0 0.0
          %1638 = vmatpush1.msra.mxu0 0.0
          %1639 = vmatprep.subr.mxu0 0.0
          %1640 = vmatpush1.msra.mxu0 0.0
          %1641 = vmatprep.subr.mxu0 0.0
          %1642 = vmatpush1.msra.mxu0 0.0
          %1643 = vmatprep.subr.mxu0 0.0
          %1644 = vmatpush1.msra.mxu0 0.0
          %1645 = vmatprep.subr.mxu0 0.0
          %1646 = vmatpush1.msra.mxu0 0.0
          %1647 = vmatprep.subr.mxu0 0.0
          %1648 = vmatpush1.msra.mxu0 0.0
          %1649 = vmatprep.subr.mxu0 0.0
          %1650 = vmatpush1.msra.mxu0 0.0
          %1651 = vmatprep.subr.mxu0 0.0
          %1652 = vmatpush1.msra.mxu0 0.0
          %1653 = vmatprep.subr.mxu0 0.0
          %1654 = vmatpush1.msra.mxu0 0.0
          %1655 = vmatprep.subr.mxu0 0.0
          %1656 = vmatpush1.msra.mxu0 0.0
          %1657 = vmatprep.subr.mxu0 0.0
          %1658 = vmatpush1.msra.mxu0 0.0
          %1659 = vmatprep.subr.mxu0 0.0
          %1660 = vmatpush1.msra.mxu0 0.0
          %1661 = vmatprep.subr.mxu0 0.0
          %1662 = vmatpush1.msra.mxu0 0.0
          %1663 = vmatprep.subr.mxu0 0.0
          %1664 = vmatpush1.msra.mxu0 0.0
          %1665 = vmatprep.subr.mxu0 0.0
          %1666 = vmatpush1.msra.mxu0 0.0
          %1667 = vmatprep.subr.mxu0 0.0
          %1668 = vmatpush1.msra.mxu0 0.0
          %1669 = vmatprep.subr.mxu0 0.0
          %1670 = vmatpush1.msra.mxu0 0.0
          %1671 = vmatprep.subr.mxu0 0.0
          %1672 = vmatpush1.msra.mxu0 0.0
          %1673 = vmatprep.subr.mxu0 0.0
          %1674 = vmatpush1.msra.mxu0 0.0
          %1675 = vmatprep.subr.mxu0 0.0
          %1676 = vmatpush1.msra.mxu0 0.0
          %1677 = vmatprep.subr.mxu0 0.0
          %1678 = vmatpush1.msra.mxu0 0.0
          %1679 = vmatprep.subr.mxu0 0.0
          %1680 = vmatpush1.msra.mxu0 0.0
          %1681 = vmatprep.subr.mxu0 0.0
          %1682 = vmatpush1.msra.mxu0 0.0
          %1683 = vmatprep.subr.mxu0 0.0
          %1684 = vmatpush1.msra.mxu0 0.0
          %1685 = vmatprep.subr.mxu0 0.0
          %1686 = vmatpush1.msra.mxu0 0.0
          %1687 = vmatprep.subr.mxu0 0.0
          %1688 = vmatpush1.msra.mxu0 0.0
          %1689 = vmatprep.subr.mxu0 0.0
          %1690 = vmatpush1.msra.mxu0 0.0
          %1691 = vmatprep.subr.mxu0 0.0
          %1692 = vmatpush1.msra.mxu0 0.0
          %1693 = vmatprep.mubr.f32.mxu0 0.0
          %1694 = vmatmul.mubr.f32.gmra.mrb[0].mxu0 %v1624
          %v1695 = vpop.f32.mrb[0].mxu0
          %v1696 = vadd.f32 0.0, %v1695
          %v1697 = vpop.f32.mrb[0].mxu0
          %1698 = vmatprep.mubr.f32.mxu0 0.0
          %1699 = vmatmul.mubr.f32.gmra.mrb[0].mxu0 %v1627
          %v1700 = vpop.f32.mrb[0].mxu0
          %v1701 = vadd.f32 0.0, %v1700
          %v1702 = vpop.f32.mrb[0].mxu0
          %1703 = vdwg.mxu0
          %1704 = vmatprep.subr.mxu0 0.0
          %1705 = vmatpush1.msra.mxu0 %v300
          %1706 = vmatprep.subr.mxu0 0.0
          %1707 = vmatpush1.msra.mxu0 %v301
          %1708 = vmatprep.subr.mxu0 0.0
          %1709 = vmatpush1.msra.mxu0 0.0
          %1710 = vmatprep.subr.mxu0 0.0
          %1711 = vmatpush1.msra.mxu0 0.0
          %1712 = vmatprep.subr.mxu0 0.0
          %1713 = vmatpush1.msra.mxu0 0.0
          %1714 = vmatprep.subr.mxu0 0.0
          %1715 = vmatpush1.msra.mxu0 0.0
          %1716 = vmatprep.subr.mxu0 0.0
          %1717 = vmatpush1.msra.mxu0 0.0
          %1718 = vmatprep.subr.mxu0 0.0
          %1719 = vmatpush1.msra.mxu0 0.0
          %1720 = vmatprep.subr.mxu0 0.0
          %1721 = vmatpush1.msra.mxu0 0.0
          %1722 = vmatprep.subr.mxu0 0.0
          %1723 = vmatpush1.msra.mxu0 0.0
          %1724 = vmatprep.subr.mxu0 0.0
          %1725 = vmatpush1.msra.mxu0 0.0
          %1726 = vmatprep.subr.mxu0 0.0
          %1727 = vmatpush1.msra.mxu0 0.0
          %1728 = vmatprep.subr.mxu0 0.0
          %1729 = vmatpush1.msra.mxu0 0.0
          %1730 = vmatprep.subr.mxu0 0.0
          %1731 = vmatpush1.msra.mxu0 0.0
          %1732 = vmatprep.subr.mxu0 0.0
          %1733 = vmatpush1.msra.mxu0 0.0
          %1734 = vmatprep.subr.mxu0 0.0
          %1735 = vmatpush1.msra.mxu0 0.0
          %1736 = vmatprep.subr.mxu0 0.0
          %1737 = vmatpush1.msra.mxu0 0.0
          %1738 = vmatprep.subr.mxu0 0.0
          %1739 = vmatpush1.msra.mxu0 0.0
          %1740 = vmatprep.subr.mxu0 0.0
          %1741 = vmatpush1.msra.mxu0 0.0
          %1742 = vmatprep.subr.mxu0 0.0
          %1743 = vmatpush1.msra.mxu0 0.0
          %1744 = vmatprep.subr.mxu0 0.0
          %1745 = vmatpush1.msra.mxu0 0.0
          %1746 = vmatprep.subr.mxu0 0.0
          %1747 = vmatpush1.msra.mxu0 0.0
          %1748 = vmatprep.subr.mxu0 0.0
          %1749 = vmatpush1.msra.mxu0 0.0
          %1750 = vmatprep.subr.mxu0 0.0
          %1751 = vmatpush1.msra.mxu0 0.0
          %1752 = vmatprep.subr.mxu0 0.0
          %1753 = vmatpush1.msra.mxu0 0.0
          %1754 = vmatprep.subr.mxu0 0.0
          %1755 = vmatpush1.msra.mxu0 0.0
          %1756 = vmatprep.subr.mxu0 0.0
          %1757 = vmatpush1.msra.mxu0 0.0
          %1758 = vmatprep.subr.mxu0 0.0
          %1759 = vmatpush1.msra.mxu0 0.0
          %1760 = vmatprep.subr.mxu0 0.0
          %1761 = vmatpush1.msra.mxu0 0.0
          %1762 = vmatprep.subr.mxu0 0.0
          %1763 = vmatpush1.msra.mxu0 0.0
          %1764 = vmatprep.subr.mxu0 0.0
          %1765 = vmatpush1.msra.mxu0 0.0
          %1766 = vmatprep.subr.mxu0 0.0
          %1767 = vmatpush1.msra.mxu0 0.0
          %1768 = vmatprep.mubr.f32.mxu0 0.0
          %1769 = vmatmul.mubr.f32.gmra.mrb[0].mxu0 %v1624
          %v1770 = vpop.f32.mrb[0].mxu0
          %v1771 = vadd.f32 0.0, %v1770
          %v1772 = vpop.f32.mrb[0].mxu0
          %1773 = vmatprep.mubr.f32.mxu0 0.0
          %1774 = vmatmul.mubr.f32.gmra.mrb[0].mxu0 %v1627
          %v1775 = vpop.f32.mrb[0].mxu0
          %v1776 = vadd.f32 0.0, %v1775
          %v1777 = vpop.f32.mrb[0].mxu0
          %1778 = vdwg.mxu0
          %s1779 = scalar_lea.vmem [#allocation7], 64
          %v1780 = vld [vmem:[%s1779] sm:$0xff]
          %v1781 = vld [vmem:[%s1779 + $0x8] sm:$0xff]
          %v1783 = vsel %vm253, %v1696, 0
          %v1786 = vsel %vm253, %v1701, 0
          %1788 = vmatprep.subr.mxu0 0.0
          %1789 = vmatpush1.msra.mxu0 %v1780
          %1790 = vmatprep.subr.mxu0 0.0
          %1791 = vmatpush1.msra.mxu0 %v1781
          %1792 = vmatprep.subr.mxu0 0.0
          %1793 = vmatpush1.msra.mxu0 0.0
          %1794 = vmatprep.subr.mxu0 0.0
          %1795 = vmatpush1.msra.mxu0 0.0
          %1796 = vmatprep.subr.mxu0 0.0
          %1797 = vmatpush1.msra.mxu0 0.0
          %1798 = vmatprep.subr.mxu0 0.0
          %1799 = vmatpush1.msra.mxu0 0.0
          %1800 = vmatprep.subr.mxu0 0.0
          %1801 = vmatpush1.msra.mxu0 0.0
          %1802 = vmatprep.subr.mxu0 0.0
          %1803 = vmatpush1.msra.mxu0 0.0
          %1804 = vmatprep.subr.mxu0 0.0
          %1805 = vmatpush1.msra.mxu0 0.0
          %1806 = vmatprep.subr.mxu0 0.0
          %1807 = vmatpush1.msra.mxu0 0.0
          %1808 = vmatprep.subr.mxu0 0.0
          %1809 = vmatpush1.msra.mxu0 0.0
          %1810 = vmatprep.subr.mxu0 0.0
          %1811 = vmatpush1.msra.mxu0 0.0
          %1812 = vmatprep.subr.mxu0 0.0
          %1813 = vmatpush1.msra.mxu0 0.0
          %1814 = vmatprep.subr.mxu0 0.0
          %1815 = vmatpush1.msra.mxu0 0.0
          %1816 = vmatprep.subr.mxu0 0.0
          %1817 = vmatpush1.msra.mxu0 0.0
          %1818 = vmatprep.subr.mxu0 0.0
          %1819 = vmatpush1.msra.mxu0 0.0
          %1820 = vmatprep.subr.mxu0 0.0
          %1821 = vmatpush1.msra.mxu0 0.0
          %1822 = vmatprep.subr.mxu0 0.0
          %1823 = vmatpush1.msra.mxu0 0.0
          %1824 = vmatprep.subr.mxu0 0.0
          %1825 = vmatpush1.msra.mxu0 0.0
          %1826 = vmatprep.subr.mxu0 0.0
          %1827 = vmatpush1.msra.mxu0 0.0
          %1828 = vmatprep.subr.mxu0 0.0
          %1829 = vmatpush1.msra.mxu0 0.0
          %1830 = vmatprep.subr.mxu0 0.0
          %1831 = vmatpush1.msra.mxu0 0.0
          %1832 = vmatprep.subr.mxu0 0.0
          %1833 = vmatpush1.msra.mxu0 0.0
          %1834 = vmatprep.subr.mxu0 0.0
          %1835 = vmatpush1.msra.mxu0 0.0
          %1836 = vmatprep.subr.mxu0 0.0
          %1837 = vmatpush1.msra.mxu0 0.0
          %1838 = vmatprep.subr.mxu0 0.0
          %1839 = vmatpush1.msra.mxu0 0.0
          %1840 = vmatprep.subr.mxu0 0.0
          %1841 = vmatpush1.msra.mxu0 0.0
          %1842 = vmatprep.subr.mxu0 0.0
          %1843 = vmatpush1.msra.mxu0 0.0
          %1844 = vmatprep.subr.mxu0 0.0
          %1845 = vmatpush1.msra.mxu0 0.0
          %1846 = vmatprep.subr.mxu0 0.0
          %1847 = vmatpush1.msra.mxu0 0.0
          %1848 = vmatprep.subr.mxu0 0.0
          %1849 = vmatpush1.msra.mxu0 0.0
          %1850 = vmatprep.subr.mxu0 0.0
          %1851 = vmatpush1.msra.mxu0 0.0
          %1852 = vmatprep.mubr.f32.mxu0 0.0
          %1853 = vmatmul.mubr.f32.gmra.mrb[0].mxu0 %v1783
          %v1854 = vpop.f32.mrb[0].mxu0
          %v1855 = vadd.f32 0.0, %v1854
          %v1856 = vpop.f32.mrb[0].mxu0
          %1857 = vmatprep.mubr.f32.mxu0 0.0
          %1858 = vmatmul.mubr.f32.gmra.mrb[0].mxu0 %v1786
          %v1859 = vpop.f32.mrb[0].mxu0
          %v1860 = vadd.f32 0.0, %v1859
          %v1861 = vpop.f32.mrb[0].mxu0
          %1862 = vdwg.mxu0
          %v1863 = vadd.f32 %v1618, %v1855
          %v1864 = vadd.f32 %v1619, %v1860
          %s1865 = scalar_lea.vmem [#allocation7], 176
          %v1866 = vld [vmem:[%s1865] sm:$0xff]
          %v1867 = vld [vmem:[%s1865 + $0x8] sm:$0xff]
          %v1869 = vsel %vm253, %v1771, 0
          %v1872 = vsel %vm253, %v1776, 0
          %1874 = vmatprep.subr.mxu0 0.0
          %1875 = vmatpush1.msra.mxu0 %v1866
          %1876 = vmatprep.subr.mxu0 0.0
          %1877 = vmatpush1.msra.mxu0 %v1867
          %1878 = vmatprep.subr.mxu0 0.0
          %1879 = vmatpush1.msra.mxu0 0.0
          %1880 = vmatprep.subr.mxu0 0.0
          %1881 = vmatpush1.msra.mxu0 0.0
          %1882 = vmatprep.subr.mxu0 0.0
          %1883 = vmatpush1.msra.mxu0 0.0
          %1884 = vmatprep.subr.mxu0 0.0
          %1885 = vmatpush1.msra.mxu0 0.0
          %1886 = vmatprep.subr.mxu0 0.0
          %1887 = vmatpush1.msra.mxu0 0.0
          %1888 = vmatprep.subr.mxu0 0.0
          %1889 = vmatpush1.msra.mxu0 0.0
          %1890 = vmatprep.subr.mxu0 0.0
          %1891 = vmatpush1.msra.mxu0 0.0
          %1892 = vmatprep.subr.mxu0 0.0
          %1893 = vmatpush1.msra.mxu0 0.0
          %1894 = vmatprep.subr.mxu0 0.0
          %1895 = vmatpush1.msra.mxu0 0.0
          %1896 = vmatprep.subr.mxu0 0.0
          %1897 = vmatpush1.msra.mxu0 0.0
          %1898 = vmatprep.subr.mxu0 0.0
          %1899 = vmatpush1.msra.mxu0 0.0
          %1900 = vmatprep.subr.mxu0 0.0
          %1901 = vmatpush1.msra.mxu0 0.0
          %1902 = vmatprep.subr.mxu0 0.0
          %1903 = vmatpush1.msra.mxu0 0.0
          %1904 = vmatprep.subr.mxu0 0.0
          %1905 = vmatpush1.msra.mxu0 0.0
          %1906 = vmatprep.subr.mxu0 0.0
          %1907 = vmatpush1.msra.mxu0 0.0
          %1908 = vmatprep.subr.mxu0 0.0
          %1909 = vmatpush1.msra.mxu0 0.0
          %1910 = vmatprep.subr.mxu0 0.0
          %1911 = vmatpush1.msra.mxu0 0.0
          %1912 = vmatprep.subr.mxu0 0.0
          %1913 = vmatpush1.msra.mxu0 0.0
          %1914 = vmatprep.subr.mxu0 0.0
          %1915 = vmatpush1.msra.mxu0 0.0
          %1916 = vmatprep.subr.mxu0 0.0
          %1917 = vmatpush1.msra.mxu0 0.0
          %1918 = vmatprep.subr.mxu0 0.0
          %1919 = vmatpush1.msra.mxu0 0.0
          %1920 = vmatprep.subr.mxu0 0.0
          %1921 = vmatpush1.msra.mxu0 0.0
          %1922 = vmatprep.subr.mxu0 0.0
          %1923 = vmatpush1.msra.mxu0 0.0
          %1924 = vmatprep.subr.mxu0 0.0
          %1925 = vmatpush1.msra.mxu0 0.0
          %1926 = vmatprep.subr.mxu0 0.0
          %1927 = vmatpush1.msra.mxu0 0.0
          %1928 = vmatprep.subr.mxu0 0.0
          %1929 = vmatpush1.msra.mxu0 0.0
          %1930 = vmatprep.subr.mxu0 0.0
          %1931 = vmatpush1.msra.mxu0 0.0
          %1932 = vmatprep.subr.mxu0 0.0
          %1933 = vmatpush1.msra.mxu0 0.0
          %1934 = vmatprep.subr.mxu0 0.0
          %1935 = vmatpush1.msra.mxu0 0.0
          %1936 = vmatprep.subr.mxu0 0.0
          %1937 = vmatpush1.msra.mxu0 0.0
          %1938 = vmatprep.mubr.f32.mxu0 0.0
          %1939 = vmatmul.mubr.f32.gmra.mrb[0].mxu0 %v1869
          %v1940 = vpop.f32.mrb[0].mxu0
          %v1941 = vadd.f32 0.0, %v1940
          %v1942 = vpop.f32.mrb[0].mxu0
          %1943 = vmatprep.mubr.f32.mxu0 0.0
          %1944 = vmatmul.mubr.f32.gmra.mrb[0].mxu0 %v1872
          %v1945 = vpop.f32.mrb[0].mxu0
          %v1946 = vadd.f32 0.0, %v1945
          %v1947 = vpop.f32.mrb[0].mxu0
          %1948 = vdwg.mxu0
          %v1949 = vadd.f32 %v1863, %v1941
          %v1950 = vadd.f32 %v1864, %v1946
          %s1951 = scalar_lea.vmem [#allocation4], 80
          %v1952 = vld [vmem:[%s1951] sm:$0xff]
          %v1953 = vld [vmem:[%s1951 + $0x8] sm:$0xff]
          %v1955 = vsel %vm253, %v1952, 0
          %v1958 = vsel %vm253, %v1953, 0
          %1960 = vmatprep.subr.mxu0 0.0
          %1961 = vmatpush1.msra.mxu0 %v298
          %1962 = vmatprep.subr.mxu0 0.0
          %1963 = vmatpush1.msra.mxu0 %v299
          %1964 = vmatprep.subr.mxu0 0.0
          %1965 = vmatpush1.msra.mxu0 0.0
          %1966 = vmatprep.subr.mxu0 0.0
          %1967 = vmatpush1.msra.mxu0 0.0
          %1968 = vmatprep.subr.mxu0 0.0
          %1969 = vmatpush1.msra.mxu0 0.0
          %1970 = vmatprep.subr.mxu0 0.0
          %1971 = vmatpush1.msra.mxu0 0.0
          %1972 = vmatprep.subr.mxu0 0.0
          %1973 = vmatpush1.msra.mxu0 0.0
          %1974 = vmatprep.subr.mxu0 0.0
          %1975 = vmatpush1.msra.mxu0 0.0
          %1976 = vmatprep.subr.mxu0 0.0
          %1977 = vmatpush1.msra.mxu0 0.0
          %1978 = vmatprep.subr.mxu0 0.0
          %1979 = vmatpush1.msra.mxu0 0.0
          %1980 = vmatprep.subr.mxu0 0.0
          %1981 = vmatpush1.msra.mxu0 0.0
          %1982 = vmatprep.subr.mxu0 0.0
          %1983 = vmatpush1.msra.mxu0 0.0
          %1984 = vmatprep.subr.mxu0 0.0
          %1985 = vmatpush1.msra.mxu0 0.0
          %1986 = vmatprep.subr.mxu0 0.0
          %1987 = vmatpush1.msra.mxu0 0.0
          %1988 = vmatprep.subr.mxu0 0.0
          %1989 = vmatpush1.msra.mxu0 0.0
          %1990 = vmatprep.subr.mxu0 0.0
          %1991 = vmatpush1.msra.mxu0 0.0
          %1992 = vmatprep.subr.mxu0 0.0
          %1993 = vmatpush1.msra.mxu0 0.0
          %1994 = vmatprep.subr.mxu0 0.0
          %1995 = vmatpush1.msra.mxu0 0.0
          %1996 = vmatprep.subr.mxu0 0.0
          %1997 = vmatpush1.msra.mxu0 0.0
          %1998 = vmatprep.subr.mxu0 0.0
          %1999 = vmatpush1.msra.mxu0 0.0
          %2000 = vmatprep.subr.mxu0 0.0
          %2001 = vmatpush1.msra.mxu0 0.0
          %2002 = vmatprep.subr.mxu0 0.0
          %2003 = vmatpush1.msra.mxu0 0.0
          %2004 = vmatprep.subr.mxu0 0.0
          %2005 = vmatpush1.msra.mxu0 0.0
          %2006 = vmatprep.subr.mxu0 0.0
          %2007 = vmatpush1.msra.mxu0 0.0
          %2008 = vmatprep.subr.mxu0 0.0
          %2009 = vmatpush1.msra.mxu0 0.0
          %2010 = vmatprep.subr.mxu0 0.0
          %2011 = vmatpush1.msra.mxu0 0.0
          %2012 = vmatprep.subr.mxu0 0.0
          %2013 = vmatpush1.msra.mxu0 0.0
          %2014 = vmatprep.subr.mxu0 0.0
          %2015 = vmatpush1.msra.mxu0 0.0
          %2016 = vmatprep.subr.mxu0 0.0
          %2017 = vmatpush1.msra.mxu0 0.0
          %2018 = vmatprep.subr.mxu0 0.0
          %2019 = vmatpush1.msra.mxu0 0.0
          %2020 = vmatprep.subr.mxu0 0.0
          %2021 = vmatpush1.msra.mxu0 0.0
          %2022 = vmatprep.subr.mxu0 0.0
          %2023 = vmatpush1.msra.mxu0 0.0
          %2024 = vmatprep.mubr.f32.mxu0 0.0
          %2025 = vmatmul.mubr.f32.gmra.mrb[0].mxu0 %v1955
          %v2026 = vpop.f32.mrb[0].mxu0
          %v2027 = vadd.f32 0.0, %v2026
          %v2028 = vpop.f32.mrb[0].mxu0
          %2029 = vmatprep.mubr.f32.mxu0 0.0
          %2030 = vmatmul.mubr.f32.gmra.mrb[0].mxu0 %v1958
          %v2031 = vpop.f32.mrb[0].mxu0
          %v2032 = vadd.f32 0.0, %v2031
          %v2033 = vpop.f32.mrb[0].mxu0
          %2034 = vdwg.mxu0
          %2035 = vmatprep.subr.mxu0 0.0
          %2036 = vmatpush1.msra.mxu0 %v300
          %2037 = vmatprep.subr.mxu0 0.0
          %2038 = vmatpush1.msra.mxu0 %v301
          %2039 = vmatprep.subr.mxu0 0.0
          %2040 = vmatpush1.msra.mxu0 0.0
          %2041 = vmatprep.subr.mxu0 0.0
          %2042 = vmatpush1.msra.mxu0 0.0
          %2043 = vmatprep.subr.mxu0 0.0
          %2044 = vmatpush1.msra.mxu0 0.0
          %2045 = vmatprep.subr.mxu0 0.0
          %2046 = vmatpush1.msra.mxu0 0.0
          %2047 = vmatprep.subr.mxu0 0.0
          %2048 = vmatpush1.msra.mxu0 0.0
          %2049 = vmatprep.subr.mxu0 0.0
          %2050 = vmatpush1.msra.mxu0 0.0
          %2051 = vmatprep.subr.mxu0 0.0
          %2052 = vmatpush1.msra.mxu0 0.0
          %2053 = vmatprep.subr.mxu0 0.0
          %2054 = vmatpush1.msra.mxu0 0.0
          %2055 = vmatprep.subr.mxu0 0.0
          %2056 = vmatpush1.msra.mxu0 0.0
          %2057 = vmatprep.subr.mxu0 0.0
          %2058 = vmatpush1.msra.mxu0 0.0
          %2059 = vmatprep.subr.mxu0 0.0
          %2060 = vmatpush1.msra.mxu0 0.0
          %2061 = vmatprep.subr.mxu0 0.0
          %2062 = vmatpush1.msra.mxu0 0.0
          %2063 = vmatprep.subr.mxu0 0.0
          %2064 = vmatpush1.msra.mxu0 0.0
          %2065 = vmatprep.subr.mxu0 0.0
          %2066 = vmatpush1.msra.mxu0 0.0
          %2067 = vmatprep.subr.mxu0 0.0
          %2068 = vmatpush1.msra.mxu0 0.0
          %2069 = vmatprep.subr.mxu0 0.0
          %2070 = vmatpush1.msra.mxu0 0.0
          %2071 = vmatprep.subr.mxu0 0.0
          %2072 = vmatpush1.msra.mxu0 0.0
          %2073 = vmatprep.subr.mxu0 0.0
          %2074 = vmatpush1.msra.mxu0 0.0
          %2075 = vmatprep.subr.mxu0 0.0
          %2076 = vmatpush1.msra.mxu0 0.0
          %2077 = vmatprep.subr.mxu0 0.0
          %2078 = vmatpush1.msra.mxu0 0.0
          %2079 = vmatprep.subr.mxu0 0.0
          %2080 = vmatpush1.msra.mxu0 0.0
          %2081 = vmatprep.subr.mxu0 0.0
          %2082 = vmatpush1.msra.mxu0 0.0
          %2083 = vmatprep.subr.mxu0 0.0
          %2084 = vmatpush1.msra.mxu0 0.0
          %2085 = vmatprep.subr.mxu0 0.0
          %2086 = vmatpush1.msra.mxu0 0.0
          %2087 = vmatprep.subr.mxu0 0.0
          %2088 = vmatpush1.msra.mxu0 0.0
          %2089 = vmatprep.subr.mxu0 0.0
          %2090 = vmatpush1.msra.mxu0 0.0
          %2091 = vmatprep.subr.mxu0 0.0
          %2092 = vmatpush1.msra.mxu0 0.0
          %2093 = vmatprep.subr.mxu0 0.0
          %2094 = vmatpush1.msra.mxu0 0.0
          %2095 = vmatprep.subr.mxu0 0.0
          %2096 = vmatpush1.msra.mxu0 0.0
          %2097 = vmatprep.subr.mxu0 0.0
          %2098 = vmatpush1.msra.mxu0 0.0
          %2099 = vmatprep.mubr.f32.mxu0 0.0
          %2100 = vmatmul.mubr.f32.gmra.mrb[0].mxu0 %v1955
          %v2101 = vpop.f32.mrb[0].mxu0
          %v2102 = vadd.f32 0.0, %v2101
          %v2103 = vpop.f32.mrb[0].mxu0
          %2104 = vmatprep.mubr.f32.mxu0 0.0
          %2105 = vmatmul.mubr.f32.gmra.mrb[0].mxu0 %v1958
          %v2106 = vpop.f32.mrb[0].mxu0
          %v2107 = vadd.f32 0.0, %v2106
          %v2108 = vpop.f32.mrb[0].mxu0
          %2109 = vdwg.mxu0
          %s2110 = scalar_lea.vmem [#allocation7], 80
          %v2111 = vld [vmem:[%s2110] sm:$0xff]
          %v2112 = vld [vmem:[%s2110 + $0x8] sm:$0xff]
          %v2114 = vsel %vm253, %v2027, 0
          %v2117 = vsel %vm253, %v2032, 0
          %2119 = vmatprep.subr.mxu0 0.0
          %2120 = vmatpush1.msra.mxu0 %v2111
          %2121 = vmatprep.subr.mxu0 0.0
          %2122 = vmatpush1.msra.mxu0 %v2112
          %2123 = vmatprep.subr.mxu0 0.0
          %2124 = vmatpush1.msra.mxu0 0.0
          %2125 = vmatprep.subr.mxu0 0.0
          %2126 = vmatpush1.msra.mxu0 0.0
          %2127 = vmatprep.subr.mxu0 0.0
          %2128 = vmatpush1.msra.mxu0 0.0
          %2129 = vmatprep.subr.mxu0 0.0
          %2130 = vmatpush1.msra.mxu0 0.0
          %2131 = vmatprep.subr.mxu0 0.0
          %2132 = vmatpush1.msra.mxu0 0.0
          %2133 = vmatprep.subr.mxu0 0.0
          %2134 = vmatpush1.msra.mxu0 0.0
          %2135 = vmatprep.subr.mxu0 0.0
          %2136 = vmatpush1.msra.mxu0 0.0
          %2137 = vmatprep.subr.mxu0 0.0
          %2138 = vmatpush1.msra.mxu0 0.0
          %2139 = vmatprep.subr.mxu0 0.0
          %2140 = vmatpush1.msra.mxu0 0.0
          %2141 = vmatprep.subr.mxu0 0.0
          %2142 = vmatpush1.msra.mxu0 0.0
          %2143 = vmatprep.subr.mxu0 0.0
          %2144 = vmatpush1.msra.mxu0 0.0
          %2145 = vmatprep.subr.mxu0 0.0
          %2146 = vmatpush1.msra.mxu0 0.0
          %2147 = vmatprep.subr.mxu0 0.0
          %2148 = vmatpush1.msra.mxu0 0.0
          %2149 = vmatprep.subr.mxu0 0.0
          %2150 = vmatpush1.msra.mxu0 0.0
          %2151 = vmatprep.subr.mxu0 0.0
          %2152 = vmatpush1.msra.mxu0 0.0
          %2153 = vmatprep.subr.mxu0 0.0
          %2154 = vmatpush1.msra.mxu0 0.0
          %2155 = vmatprep.subr.mxu0 0.0
          %2156 = vmatpush1.msra.mxu0 0.0
          %2157 = vmatprep.subr.mxu0 0.0
          %2158 = vmatpush1.msra.mxu0 0.0
          %2159 = vmatprep.subr.mxu0 0.0
          %2160 = vmatpush1.msra.mxu0 0.0
          %2161 = vmatprep.subr.mxu0 0.0
          %2162 = vmatpush1.msra.mxu0 0.0
          %2163 = vmatprep.subr.mxu0 0.0
          %2164 = vmatpush1.msra.mxu0 0.0
          %2165 = vmatprep.subr.mxu0 0.0
          %2166 = vmatpush1.msra.mxu0 0.0
          %2167 = vmatprep.subr.mxu0 0.0
          %2168 = vmatpush1.msra.mxu0 0.0
          %2169 = vmatprep.subr.mxu0 0.0
          %2170 = vmatpush1.msra.mxu0 0.0
          %2171 = vmatprep.subr.mxu0 0.0
          %2172 = vmatpush1.msra.mxu0 0.0
          %2173 = vmatprep.subr.mxu0 0.0
          %2174 = vmatpush1.msra.mxu0 0.0
          %2175 = vmatprep.subr.mxu0 0.0
          %2176 = vmatpush1.msra.mxu0 0.0
          %2177 = vmatprep.subr.mxu0 0.0
          %2178 = vmatpush1.msra.mxu0 0.0
          %2179 = vmatprep.subr.mxu0 0.0
          %2180 = vmatpush1.msra.mxu0 0.0
          %2181 = vmatprep.subr.mxu0 0.0
          %2182 = vmatpush1.msra.mxu0 0.0
          %2183 = vmatprep.mubr.f32.mxu0 0.0
          %2184 = vmatmul.mubr.f32.gmra.mrb[0].mxu0 %v2114
          %v2185 = vpop.f32.mrb[0].mxu0
          %v2186 = vadd.f32 0.0, %v2185
          %v2187 = vpop.f32.mrb[0].mxu0
          %2188 = vmatprep.mubr.f32.mxu0 0.0
          %2189 = vmatmul.mubr.f32.gmra.mrb[0].mxu0 %v2117
          %v2190 = vpop.f32.mrb[0].mxu0
          %v2191 = vadd.f32 0.0, %v2190
          %v2192 = vpop.f32.mrb[0].mxu0
          %2193 = vdwg.mxu0
          %v2194 = vadd.f32 %v1949, %v2186
          %v2195 = vadd.f32 %v1950, %v2191
          %s2196 = scalar_lea.vmem [#allocation7], 192
          %v2197 = vld [vmem:[%s2196] sm:$0xff]
          %v2198 = vld [vmem:[%s2196 + $0x8] sm:$0xff]
          %v2200 = vsel %vm253, %v2102, 0
          %v2203 = vsel %vm253, %v2107, 0
          %2205 = vmatprep.subr.mxu0 0.0
          %2206 = vmatpush1.msra.mxu0 %v2197
          %2207 = vmatprep.subr.mxu0 0.0
          %2208 = vmatpush1.msra.mxu0 %v2198
          %2209 = vmatprep.subr.mxu0 0.0
          %2210 = vmatpush1.msra.mxu0 0.0
          %2211 = vmatprep.subr.mxu0 0.0
          %2212 = vmatpush1.msra.mxu0 0.0
          %2213 = vmatprep.subr.mxu0 0.0
          %2214 = vmatpush1.msra.mxu0 0.0
          %2215 = vmatprep.subr.mxu0 0.0
          %2216 = vmatpush1.msra.mxu0 0.0
          %2217 = vmatprep.subr.mxu0 0.0
          %2218 = vmatpush1.msra.mxu0 0.0
          %2219 = vmatprep.subr.mxu0 0.0
          %2220 = vmatpush1.msra.mxu0 0.0
          %2221 = vmatprep.subr.mxu0 0.0
          %2222 = vmatpush1.msra.mxu0 0.0
          %2223 = vmatprep.subr.mxu0 0.0
          %2224 = vmatpush1.msra.mxu0 0.0
          %2225 = vmatprep.subr.mxu0 0.0
          %2226 = vmatpush1.msra.mxu0 0.0
          %2227 = vmatprep.subr.mxu0 0.0
          %2228 = vmatpush1.msra.mxu0 0.0
          %2229 = vmatprep.subr.mxu0 0.0
          %2230 = vmatpush1.msra.mxu0 0.0
          %2231 = vmatprep.subr.mxu0 0.0
          %2232 = vmatpush1.msra.mxu0 0.0
          %2233 = vmatprep.subr.mxu0 0.0
          %2234 = vmatpush1.msra.mxu0 0.0
          %2235 = vmatprep.subr.mxu0 0.0
          %2236 = vmatpush1.msra.mxu0 0.0
          %2237 = vmatprep.subr.mxu0 0.0
          %2238 = vmatpush1.msra.mxu0 0.0
          %2239 = vmatprep.subr.mxu0 0.0
          %2240 = vmatpush1.msra.mxu0 0.0
          %2241 = vmatprep.subr.mxu0 0.0
          %2242 = vmatpush1.msra.mxu0 0.0
          %2243 = vmatprep.subr.mxu0 0.0
          %2244 = vmatpush1.msra.mxu0 0.0
          %2245 = vmatprep.subr.mxu0 0.0
          %2246 = vmatpush1.msra.mxu0 0.0
          %2247 = vmatprep.subr.mxu0 0.0
          %2248 = vmatpush1.msra.mxu0 0.0
          %2249 = vmatprep.subr.mxu0 0.0
          %2250 = vmatpush1.msra.mxu0 0.0
          %2251 = vmatprep.subr.mxu0 0.0
          %2252 = vmatpush1.msra.mxu0 0.0
          %2253 = vmatprep.subr.mxu0 0.0
          %2254 = vmatpush1.msra.mxu0 0.0
          %2255 = vmatprep.subr.mxu0 0.0
          %2256 = vmatpush1.msra.mxu0 0.0
          %2257 = vmatprep.subr.mxu0 0.0
          %2258 = vmatpush1.msra.mxu0 0.0
          %2259 = vmatprep.subr.mxu0 0.0
          %2260 = vmatpush1.msra.mxu0 0.0
          %2261 = vmatprep.subr.mxu0 0.0
          %2262 = vmatpush1.msra.mxu0 0.0
          %2263 = vmatprep.subr.mxu0 0.0
          %2264 = vmatpush1.msra.mxu0 0.0
          %2265 = vmatprep.subr.mxu0 0.0
          %2266 = vmatpush1.msra.mxu0 0.0
          %2267 = vmatprep.subr.mxu0 0.0
          %2268 = vmatpush1.msra.mxu0 0.0
          %2269 = vmatprep.mubr.f32.mxu0 0.0
          %2270 = vmatmul.mubr.f32.gmra.mrb[0].mxu0 %v2200
          %v2271 = vpop.f32.mrb[0].mxu0
          %v2272 = vadd.f32 0.0, %v2271
          %v2273 = vpop.f32.mrb[0].mxu0
          %2274 = vmatprep.mubr.f32.mxu0 0.0
          %2275 = vmatmul.mubr.f32.gmra.mrb[0].mxu0 %v2203
          %v2276 = vpop.f32.mrb[0].mxu0
          %v2277 = vadd.f32 0.0, %v2276
          %v2278 = vpop.f32.mrb[0].mxu0
          %2279 = vdwg.mxu0
          %v2280 = vadd.f32 %v2194, %v2272
          %v2281 = vadd.f32 %v2195, %v2277
          %s2282 = scalar_lea.vmem [#allocation4], 96
          %v2283 = vld [vmem:[%s2282] sm:$0xff]
          %v2284 = vld [vmem:[%s2282 + $0x8] sm:$0xff]
          %v2286 = vsel %vm253, %v2283, 0
          %v2289 = vsel %vm253, %v2284, 0
          %2291 = vmatprep.subr.mxu0 0.0
          %2292 = vmatpush1.msra.mxu0 %v298
          %2293 = vmatprep.subr.mxu0 0.0
          %2294 = vmatpush1.msra.mxu0 %v299
          %2295 = vmatprep.subr.mxu0 0.0
          %2296 = vmatpush1.msra.mxu0 0.0
          %2297 = vmatprep.subr.mxu0 0.0
          %2298 = vmatpush1.msra.mxu0 0.0
          %2299 = vmatprep.subr.mxu0 0.0
          %2300 = vmatpush1.msra.mxu0 0.0
          %2301 = vmatprep.subr.mxu0 0.0
          %2302 = vmatpush1.msra.mxu0 0.0
          %2303 = vmatprep.subr.mxu0 0.0
          %2304 = vmatpush1.msra.mxu0 0.0
          %2305 = vmatprep.subr.mxu0 0.0
          %2306 = vmatpush1.msra.mxu0 0.0
          %2307 = vmatprep.subr.mxu0 0.0
          %2308 = vmatpush1.msra.mxu0 0.0
          %2309 = vmatprep.subr.mxu0 0.0
          %2310 = vmatpush1.msra.mxu0 0.0
          %2311 = vmatprep.subr.mxu0 0.0
          %2312 = vmatpush1.msra.mxu0 0.0
          %2313 = vmatprep.subr.mxu0 0.0
          %2314 = vmatpush1.msra.mxu0 0.0
          %2315 = vmatprep.subr.mxu0 0.0
          %2316 = vmatpush1.msra.mxu0 0.0
          %2317 = vmatprep.subr.mxu0 0.0
          %2318 = vmatpush1.msra.mxu0 0.0
          %2319 = vmatprep.subr.mxu0 0.0
          %2320 = vmatpush1.msra.mxu0 0.0
          %2321 = vmatprep.subr.mxu0 0.0
          %2322 = vmatpush1.msra.mxu0 0.0
          %2323 = vmatprep.subr.mxu0 0.0
          %2324 = vmatpush1.msra.mxu0 0.0
          %2325 = vmatprep.subr.mxu0 0.0
          %2326 = vmatpush1.msra.mxu0 0.0
          %2327 = vmatprep.subr.mxu0 0.0
          %2328 = vmatpush1.msra.mxu0 0.0
          %2329 = vmatprep.subr.mxu0 0.0
          %2330 = vmatpush1.msra.mxu0 0.0
          %2331 = vmatprep.subr.mxu0 0.0
          %2332 = vmatpush1.msra.mxu0 0.0
          %2333 = vmatprep.subr.mxu0 0.0
          %2334 = vmatpush1.msra.mxu0 0.0
          %2335 = vmatprep.subr.mxu0 0.0
          %2336 = vmatpush1.msra.mxu0 0.0
          %2337 = vmatprep.subr.mxu0 0.0
          %2338 = vmatpush1.msra.mxu0 0.0
          %2339 = vmatprep.subr.mxu0 0.0
          %2340 = vmatpush1.msra.mxu0 0.0
          %2341 = vmatprep.subr.mxu0 0.0
          %2342 = vmatpush1.msra.mxu0 0.0
          %2343 = vmatprep.subr.mxu0 0.0
          %2344 = vmatpush1.msra.mxu0 0.0
          %2345 = vmatprep.subr.mxu0 0.0
          %2346 = vmatpush1.msra.mxu0 0.0
          %2347 = vmatprep.subr.mxu0 0.0
          %2348 = vmatpush1.msra.mxu0 0.0
          %2349 = vmatprep.subr.mxu0 0.0
          %2350 = vmatpush1.msra.mxu0 0.0
          %2351 = vmatprep.subr.mxu0 0.0
          %2352 = vmatpush1.msra.mxu0 0.0
          %2353 = vmatprep.subr.mxu0 0.0
          %2354 = vmatpush1.msra.mxu0 0.0
          %2355 = vmatprep.mubr.f32.mxu0 0.0
          %2356 = vmatmul.mubr.f32.gmra.mrb[0].mxu0 %v2286
          %v2357 = vpop.f32.mrb[0].mxu0
          %v2358 = vadd.f32 0.0, %v2357
          %v2359 = vpop.f32.mrb[0].mxu0
          %2360 = vmatprep.mubr.f32.mxu0 0.0
          %2361 = vmatmul.mubr.f32.gmra.mrb[0].mxu0 %v2289
          %v2362 = vpop.f32.mrb[0].mxu0
          %v2363 = vadd.f32 0.0, %v2362
          %v2364 = vpop.f32.mrb[0].mxu0
          %2365 = vdwg.mxu0
          %2366 = vmatprep.subr.mxu0 0.0
          %2367 = vmatpush1.msra.mxu0 %v300
          %2368 = vmatprep.subr.mxu0 0.0
          %2369 = vmatpush1.msra.mxu0 %v301
          %2370 = vmatprep.subr.mxu0 0.0
          %2371 = vmatpush1.msra.mxu0 0.0
          %2372 = vmatprep.subr.mxu0 0.0
          %2373 = vmatpush1.msra.mxu0 0.0
          %2374 = vmatprep.subr.mxu0 0.0
          %2375 = vmatpush1.msra.mxu0 0.0
          %2376 = vmatprep.subr.mxu0 0.0
          %2377 = vmatpush1.msra.mxu0 0.0
          %2378 = vmatprep.subr.mxu0 0.0
          %2379 = vmatpush1.msra.mxu0 0.0
          %2380 = vmatprep.subr.mxu0 0.0
          %2381 = vmatpush1.msra.mxu0 0.0
          %2382 = vmatprep.subr.mxu0 0.0
          %2383 = vmatpush1.msra.mxu0 0.0
          %2384 = vmatprep.subr.mxu0 0.0
          %2385 = vmatpush1.msra.mxu0 0.0
          %2386 = vmatprep.subr.mxu0 0.0
          %2387 = vmatpush1.msra.mxu0 0.0
          %2388 = vmatprep.subr.mxu0 0.0
          %2389 = vmatpush1.msra.mxu0 0.0
          %2390 = vmatprep.subr.mxu0 0.0
          %2391 = vmatpush1.msra.mxu0 0.0
          %2392 = vmatprep.subr.mxu0 0.0
          %2393 = vmatpush1.msra.mxu0 0.0
          %2394 = vmatprep.subr.mxu0 0.0
          %2395 = vmatpush1.msra.mxu0 0.0
          %2396 = vmatprep.subr.mxu0 0.0
          %2397 = vmatpush1.msra.mxu0 0.0
          %2398 = vmatprep.subr.mxu0 0.0
          %2399 = vmatpush1.msra.mxu0 0.0
          %2400 = vmatprep.subr.mxu0 0.0
          %2401 = vmatpush1.msra.mxu0 0.0
          %2402 = vmatprep.subr.mxu0 0.0
          %2403 = vmatpush1.msra.mxu0 0.0
          %2404 = vmatprep.subr.mxu0 0.0
          %2405 = vmatpush1.msra.mxu0 0.0
          %2406 = vmatprep.subr.mxu0 0.0
          %2407 = vmatpush1.msra.mxu0 0.0
          %2408 = vmatprep.subr.mxu0 0.0
          %2409 = vmatpush1.msra.mxu0 0.0
          %2410 = vmatprep.subr.mxu0 0.0
          %2411 = vmatpush1.msra.mxu0 0.0
          %2412 = vmatprep.subr.mxu0 0.0
          %2413 = vmatpush1.msra.mxu0 0.0
          %2414 = vmatprep.subr.mxu0 0.0
          %2415 = vmatpush1.msra.mxu0 0.0
          %2416 = vmatprep.subr.mxu0 0.0
          %2417 = vmatpush1.msra.mxu0 0.0
          %2418 = vmatprep.subr.mxu0 0.0
          %2419 = vmatpush1.msra.mxu0 0.0
          %2420 = vmatprep.subr.mxu0 0.0
          %2421 = vmatpush1.msra.mxu0 0.0
          %2422 = vmatprep.subr.mxu0 0.0
          %2423 = vmatpush1.msra.mxu0 0.0
          %2424 = vmatprep.subr.mxu0 0.0
          %2425 = vmatpush1.msra.mxu0 0.0
          %2426 = vmatprep.subr.mxu0 0.0
          %2427 = vmatpush1.msra.mxu0 0.0
          %2428 = vmatprep.subr.mxu0 0.0
          %2429 = vmatpush1.msra.mxu0 0.0
          %2430 = vmatprep.mubr.f32.mxu0 0.0
          %2431 = vmatmul.mubr.f32.gmra.mrb[0].mxu0 %v2286
          %v2432 = vpop.f32.mrb[0].mxu0
          %v2433 = vadd.f32 0.0, %v2432
          %v2434 = vpop.f32.mrb[0].mxu0
          %2435 = vmatprep.mubr.f32.mxu0 0.0
          %2436 = vmatmul.mubr.f32.gmra.mrb[0].mxu0 %v2289
          %v2437 = vpop.f32.mrb[0].mxu0
          %v2438 = vadd.f32 0.0, %v2437
          %v2439 = vpop.f32.mrb[0].mxu0
          %2440 = vdwg.mxu0
          %s2441 = scalar_lea.vmem [#allocation7], 96
          %v2442 = vld [vmem:[%s2441] sm:$0xff]
          %v2443 = vld [vmem:[%s2441 + $0x8] sm:$0xff]
          %v2445 = vsel %vm253, %v2358, 0
          %v2448 = vsel %vm253, %v2363, 0
          %2450 = vmatprep.subr.mxu0 0.0
          %2451 = vmatpush1.msra.mxu0 %v2442
          %2452 = vmatprep.subr.mxu0 0.0
          %2453 = vmatpush1.msra.mxu0 %v2443
          %2454 = vmatprep.subr.mxu0 0.0
          %2455 = vmatpush1.msra.mxu0 0.0
          %2456 = vmatprep.subr.mxu0 0.0
          %2457 = vmatpush1.msra.mxu0 0.0
          %2458 = vmatprep.subr.mxu0 0.0
          %2459 = vmatpush1.msra.mxu0 0.0
          %2460 = vmatprep.subr.mxu0 0.0
          %2461 = vmatpush1.msra.mxu0 0.0
          %2462 = vmatprep.subr.mxu0 0.0
          %2463 = vmatpush1.msra.mxu0 0.0
          %2464 = vmatprep.subr.mxu0 0.0
          %2465 = vmatpush1.msra.mxu0 0.0
          %2466 = vmatprep.subr.mxu0 0.0
          %2467 = vmatpush1.msra.mxu0 0.0
          %2468 = vmatprep.subr.mxu0 0.0
          %2469 = vmatpush1.msra.mxu0 0.0
          %2470 = vmatprep.subr.mxu0 0.0
          %2471 = vmatpush1.msra.mxu0 0.0
          %2472 = vmatprep.subr.mxu0 0.0
          %2473 = vmatpush1.msra.mxu0 0.0
          %2474 = vmatprep.subr.mxu0 0.0
          %2475 = vmatpush1.msra.mxu0 0.0
          %2476 = vmatprep.subr.mxu0 0.0
          %2477 = vmatpush1.msra.mxu0 0.0
          %2478 = vmatprep.subr.mxu0 0.0
          %2479 = vmatpush1.msra.mxu0 0.0
          %2480 = vmatprep.subr.mxu0 0.0
          %2481 = vmatpush1.msra.mxu0 0.0
          %2482 = vmatprep.subr.mxu0 0.0
          %2483 = vmatpush1.msra.mxu0 0.0
          %2484 = vmatprep.subr.mxu0 0.0
          %2485 = vmatpush1.msra.mxu0 0.0
          %2486 = vmatprep.subr.mxu0 0.0
          %2487 = vmatpush1.msra.mxu0 0.0
          %2488 = vmatprep.subr.mxu0 0.0
          %2489 = vmatpush1.msra.mxu0 0.0
          %2490 = vmatprep.subr.mxu0 0.0
          %2491 = vmatpush1.msra.mxu0 0.0
          %2492 = vmatprep.subr.mxu0 0.0
          %2493 = vmatpush1.msra.mxu0 0.0
          %2494 = vmatprep.subr.mxu0 0.0
          %2495 = vmatpush1.msra.mxu0 0.0
          %2496 = vmatprep.subr.mxu0 0.0
          %2497 = vmatpush1.msra.mxu0 0.0
          %2498 = vmatprep.subr.mxu0 0.0
          %2499 = vmatpush1.msra.mxu0 0.0
          %2500 = vmatprep.subr.mxu0 0.0
          %2501 = vmatpush1.msra.mxu0 0.0
          %2502 = vmatprep.subr.mxu0 0.0
          %2503 = vmatpush1.msra.mxu0 0.0
          %2504 = vmatprep.subr.mxu0 0.0
          %2505 = vmatpush1.msra.mxu0 0.0
          %2506 = vmatprep.subr.mxu0 0.0
          %2507 = vmatpush1.msra.mxu0 0.0
          %2508 = vmatprep.subr.mxu0 0.0
          %2509 = vmatpush1.msra.mxu0 0.0
          %2510 = vmatprep.subr.mxu0 0.0
          %2511 = vmatpush1.msra.mxu0 0.0
          %2512 = vmatprep.subr.mxu0 0.0
          %2513 = vmatpush1.msra.mxu0 0.0
          %2514 = vmatprep.mubr.f32.mxu0 0.0
          %2515 = vmatmul.mubr.f32.gmra.mrb[0].mxu0 %v2445
          %v2516 = vpop.f32.mrb[0].mxu0
          %v2517 = vadd.f32 0.0, %v2516
          %v2518 = vpop.f32.mrb[0].mxu0
          %2519 = vmatprep.mubr.f32.mxu0 0.0
          %2520 = vmatmul.mubr.f32.gmra.mrb[0].mxu0 %v2448
          %v2521 = vpop.f32.mrb[0].mxu0
          %v2522 = vadd.f32 0.0, %v2521
          %v2523 = vpop.f32.mrb[0].mxu0
          %2524 = vdwg.mxu0
          %v2525 = vadd.f32 %v2280, %v2517
          %v2526 = vadd.f32 %v2281, %v2522
          %s2527 = scalar_lea.vmem [#allocation7], 208
          %v2528 = vld [vmem:[%s2527] sm:$0xff]
          %v2529 = vld [vmem:[%s2527 + $0x8] sm:$0xff]
          %v2531 = vsel %vm253, %v2433, 0
          %v2534 = vsel %vm253, %v2438, 0
          %2536 = vmatprep.subr.mxu0 0.0
          %2537 = vmatpush1.msra.mxu0 %v2528
          %2538 = vmatprep.subr.mxu0 0.0
          %2539 = vmatpush1.msra.mxu0 %v2529
          %2540 = vmatprep.subr.mxu0 0.0
          %2541 = vmatpush1.msra.mxu0 0.0
          %2542 = vmatprep.subr.mxu0 0.0
          %2543 = vmatpush1.msra.mxu0 0.0
          %2544 = vmatprep.subr.mxu0 0.0
          %2545 = vmatpush1.msra.mxu0 0.0
          %2546 = vmatprep.subr.mxu0 0.0
          %2547 = vmatpush1.msra.mxu0 0.0
          %2548 = vmatprep.subr.mxu0 0.0
          %2549 = vmatpush1.msra.mxu0 0.0
          %2550 = vmatprep.subr.mxu0 0.0
          %2551 = vmatpush1.msra.mxu0 0.0
          %2552 = vmatprep.subr.mxu0 0.0
          %2553 = vmatpush1.msra.mxu0 0.0
          %2554 = vmatprep.subr.mxu0 0.0
          %2555 = vmatpush1.msra.mxu0 0.0
          %2556 = vmatprep.subr.mxu0 0.0
          %2557 = vmatpush1.msra.mxu0 0.0
          %2558 = vmatprep.subr.mxu0 0.0
          %2559 = vmatpush1.msra.mxu0 0.0
          %2560 = vmatprep.subr.mxu0 0.0
          %2561 = vmatpush1.msra.mxu0 0.0
          %2562 = vmatprep.subr.mxu0 0.0
          %2563 = vmatpush1.msra.mxu0 0.0
          %2564 = vmatprep.subr.mxu0 0.0
          %2565 = vmatpush1.msra.mxu0 0.0
          %2566 = vmatprep.subr.mxu0 0.0
          %2567 = vmatpush1.msra.mxu0 0.0
          %2568 = vmatprep.subr.mxu0 0.0
          %2569 = vmatpush1.msra.mxu0 0.0
          %2570 = vmatprep.subr.mxu0 0.0
          %2571 = vmatpush1.msra.mxu0 0.0
          %2572 = vmatprep.subr.mxu0 0.0
          %2573 = vmatpush1.msra.mxu0 0.0
          %2574 = vmatprep.subr.mxu0 0.0
          %2575 = vmatpush1.msra.mxu0 0.0
          %2576 = vmatprep.subr.mxu0 0.0
          %2577 = vmatpush1.msra.mxu0 0.0
          %2578 = vmatprep.subr.mxu0 0.0
          %2579 = vmatpush1.msra.mxu0 0.0
          %2580 = vmatprep.subr.mxu0 0.0
          %2581 = vmatpush1.msra.mxu0 0.0
          %2582 = vmatprep.subr.mxu0 0.0
          %2583 = vmatpush1.msra.mxu0 0.0
          %2584 = vmatprep.subr.mxu0 0.0
          %2585 = vmatpush1.msra.mxu0 0.0
          %2586 = vmatprep.subr.mxu0 0.0
          %2587 = vmatpush1.msra.mxu0 0.0
          %2588 = vmatprep.subr.mxu0 0.0
          %2589 = vmatpush1.msra.mxu0 0.0
          %2590 = vmatprep.subr.mxu0 0.0
          %2591 = vmatpush1.msra.mxu0 0.0
          %2592 = vmatprep.subr.mxu0 0.0
          %2593 = vmatpush1.msra.mxu0 0.0
          %2594 = vmatprep.subr.mxu0 0.0
          %2595 = vmatpush1.msra.mxu0 0.0
          %2596 = vmatprep.subr.mxu0 0.0
          %2597 = vmatpush1.msra.mxu0 0.0
          %2598 = vmatprep.subr.mxu0 0.0
          %2599 = vmatpush1.msra.mxu0 0.0
          %2600 = vmatprep.mubr.f32.mxu0 0.0
          %2601 = vmatmul.mubr.f32.gmra.mrb[0].mxu0 %v2531
          %v2602 = vpop.f32.mrb[0].mxu0
          %v2603 = vadd.f32 0.0, %v2602
          %v2604 = vpop.f32.mrb[0].mxu0
          %2605 = vmatprep.mubr.f32.mxu0 0.0
          %2606 = vmatmul.mubr.f32.gmra.mrb[0].mxu0 %v2534
          %v2607 = vpop.f32.mrb[0].mxu0
          %v2608 = vadd.f32 0.0, %v2607
          %v2609 = vpop.f32.mrb[0].mxu0
          %2610 = vdwg.mxu0
          %v2611 = vadd.f32 %v2525, %v2603
          %v2612 = vadd.f32 %v2526, %v2608
          %v2613 = vxor.u32 %v2611, 2147483648
          %v2614 = vxor.u32 %v2612, 2147483648
          %v2615 = vmul.f32 %v2613, 1.442695
          %v2616 = vpow.pop %v2615
          %v2617 = vmul.f32 %v2614, 1.442695
          %v2618 = vpow.pop %v2617
          %v2619 = vadd.f32 %v2616, 1.0
          %v2620 = vadd.f32 %v2618, 1.0
          %v2621 = vrcp.pop %v2619
          %v2622 = vmul.f32 1.0, %v2621
          %v2623 = vrcp.pop %v2620
          %v2624 = vmul.f32 1.0, %v2623
          %2625 = vst.msk [vmem:[%s232] sm:$0xff] %vm253, %v2622
          %2626 = vst.msk [vmem:[%s232 + $0x8] sm:$0xff] %vm253, %v2624
        $region52: #{tpu_custom_call.1} parent=31 // pred_fallthru
          _
        %s2627 = sand.u32 %s109, 1
        %s2628 = scalar_lea.sflag [#allocation6], %s2627
        %s2629 = sand.u32 %s109, 1
        %s2630 = smul.addr %s2629, 16
        %s2631 = scalar_lea.vmem [#allocation10], %s2630
        // Predicated region
        $region53: #{tpu_custom_call.1} parent=31 // pred_check
          %p2632 = pneg %p119
        $region54: #{tpu_custom_call.1} parent=31 // pred_check_branch
          %2634 = sbr.rel (%p2632) target = $region56
        $region55: #{tpu_custom_call.1} parent=31 // pred_region
          %s2636 = ssub.s32 256, 256
          %2637 = vsyncadd %s2628, %s2636
          %s2638 = smul.addr %s23, 2
          %s2639 = smul.addr %s2638, 128
          %s2640 = scalar_lea.hbm %s3, %s2639
          %s2641 = sshll.u32 %s2631, 4
          %s2642 = int_to_ptr.vmem [resolvable:$true] %s2641
          %2647 = dma.vmem_to_hbm [thread:$0]  %s2642, 256, %s2640, %s2628, 128, 128, 8
        $region56: #{tpu_custom_call.1} parent=31 // pred_fallthru
          _
      $region32: #{tpu_custom_call.1} parent=5 // pred_fallthru
        _
      %p2648 = scmp.le.s32.totalorder 2, %s14
      // Predicated region
      $region57: #{tpu_custom_call.1} parent=5 // pred_check
        %p2649 = pneg %p2648
      $region58: #{tpu_custom_call.1} parent=5 // pred_check_branch
        %2651 = sbr.rel (%p2649) target = $region60
      $region59: #{tpu_custom_call.1} parent=5 // pred_region
        %s2652 = ssub.s32 %s14, 2
        // Predicated region
        $region61: #{tpu_custom_call.1} parent=59 // pred_check
          %p2653 = pneg %p125
        $region62: #{tpu_custom_call.1} parent=59 // pred_check_branch
          %2655 = sbr.rel (%p2653) target = $region64
        $region63: #{tpu_custom_call.1} parent=59 // pred_region
          %s2656 = sand.u32 %s110, 1
          %s2657 = scalar_lea.sflag [#allocation6], %s2656
          %s2658 = sand.u32 %s110, 1
          %s2659 = smul.addr %s2658, 16
          %s2660 = scalar_lea.vmem [#allocation10], %s2659
          %2661 = dma.done %s2657, 256
        $region64: #{tpu_custom_call.1} parent=59 // pred_fallthru
          _
      $region60: #{tpu_custom_call.1} parent=5 // pred_fallthru
        _
    $region6: #{tpu_custom_call.1} parent=1 // loop_footer
      %s18 = sadd.s32 1, %s14
    $region7: #{tpu_custom_call.1} parent=1 // loop_footer_branch
      %13 = sbr.rel target = $region3
    $region8: #{tpu_custom_call.1} parent=1 // loop_exit
      _
    %2662 = vsyncpa [#allocation5], 1
    %s2663 = scalar_lea.sflag [#allocation5], 1
    %2664 = vsyncpa %s2663, 1
    %2665 = vsyncpa [#allocation8], 1
    %2666 = vsyncpa [#allocation6], 1
    %s2667 = scalar_lea.sflag [#allocation6], 1
    %2668 = vsyncpa %s2667, 1

</llo_original>
